<compile_context>
chip_gen: v5e
topology: v5e:2x2
jax: 0.10.0
libtpu: 0.0.40
codegen_flags: <defaults>
</compile_context>

<pallas_src>
import jax
import jax.numpy as jnp
from jax.experimental import pallas as pl
from jax.experimental.pallas import tpu as pltpu


def _round_up(x, m):
    return ((x + m - 1) // m) * m


def _activate(x, act):
    if act == "hardswish":
        return x * jnp.clip(x + 3.0, 0.0, 6.0) * (1.0 / 6.0)
    if act == "relu":                      # ConvBNActivation uses nn.ReLU6
        return jnp.clip(x, 0.0, 6.0)
    return x


# ----------------------------------------------------------------------------
# Kernel A: expand (1x1) + depthwise kxk + BN + activation + fused SE
# ----------------------------------------------------------------------------
def _make_expand_dw_se_kernel(*, h, w, h_out, w_out, k, stride, pad, cexp_p,
                              act, has_expand, use_se):
    inv_hw_out = 1.0 / float(h_out * w_out)

    def kernel(*refs):
        i = 0
        x_ref = refs[i]; i += 1                        # (1, H*W, Cin_p) bf16
        if has_expand:
            we_ref, be_ref = refs[i], refs[i + 1]; i += 2
        wd_ref, bd_ref = refs[i], refs[i + 1]; i += 2  # (k*k, Cexp_p), (1, Cexp_p)
        if use_se:
            w1_ref, w2_ref = refs[i], refs[i + 1]; i += 2
        y_ref, se_ref = refs[i], refs[i + 1]; i += 2   # outputs
        xp_ref = refs[i]                               # VMEM scratch (H+2p, W+2p, Cexp_p)

        # ---- 1x1 expansion: conv + folded BN + activation (MXU) ----
        if has_expand:
            xe = jnp.dot(x_ref[0], we_ref[...],
                         preferred_element_type=jnp.float32)
            xe = _activate(xe + be_ref[...], act)
        else:
            xe = x_ref[0].astype(jnp.float32)

        # ---- zero-padded spatial scratch (replaces conv zero-padding) ----
        xp_ref[...] = jnp.zeros((h + 2 * pad, w + 2 * pad, cexp_p), jnp.float32)
        xp_ref[pad:pad + h, pad:pad + w, :] = xe.reshape(h, w, cexp_p)

        # ---- depthwise kxk conv: k*k shifted tap accumulations (VPU) ----
        wd = wd_ref[...]                               # (k*k, Cexp_p) BN-folded
        bd = bd_ref[...].reshape(1, 1, cexp_p)
        acc = jnp.zeros((h_out, w_out, cexp_p), jnp.float32)
        for dy in range(k):
            for dx in range(k):
                t = dy * k + dx
                tap_w = wd[t:t + 1, :].reshape(1, 1, cexp_p)
                if stride == 1:
                    win = xp_ref[dy:dy + h_out, dx:dx + w_out, :]
                else:
                    win = jax.lax.slice(
                        xp_ref[...], (dy, dx, 0),
                        (dy + stride * (h_out - 1) + 1,
                         dx + stride * (w_out - 1) + 1, cexp_p),
                        (stride, stride, 1))
                acc = acc + win * tap_w
        y = _activate(acc + bd, act)
        y_ref[0] = y.astype(y_ref.dtype)

        # ---- fused SE: avg-pool -> FC -> ReLU -> FC -> HardSigmoid ----
        if use_se:
            pooled = jnp.sum(y.reshape(h_out * w_out, cexp_p),
                             axis=0, keepdims=True) * inv_hw_out
            h1 = jnp.maximum(
                jnp.dot(pooled, w1_ref[...], preferred_element_type=jnp.float32),
                0.0)
            h2 = jnp.dot(h1, w2_ref[...], preferred_element_type=jnp.float32)
            se_ref[0] = jnp.clip(h2 + 3.0, 0.0, 6.0) * (1.0 / 6.0)
        else:
            se_ref[0] = jnp.ones((1, cexp_p), jnp.float32)

    return kernel


# ----------------------------------------------------------------------------
# Kernel B: SE scaling + 1x1 projection + folded BN + residual
# ----------------------------------------------------------------------------
def _make_project_kernel(*, use_se, use_res):
    def kernel(*refs):
        i = 0
        x_ref = refs[i]; i += 1                        # (1, tm, Cexp_p) bf16
        if use_se:
            se_ref = refs[i]; i += 1                   # (1, 1, Cexp_p) f32
        w_ref, b_ref = refs[i], refs[i + 1]; i += 2    # (Cexp_p, Cout_p) bf16, (1, Cout_p)
        if use_res:
            res_ref = refs[i]; i += 1                  # (1, tm, Cout_p) f32
        o_ref = refs[i]                                # (1, tm, Cout_p) f32

        xv = x_ref[0].astype(jnp.float32)
        if use_se:
            xv = xv * se_ref[0]                        # broadcast (1, Cexp_p)
        y = jnp.dot(xv.astype(jnp.bfloat16), w_ref[...],
                    preferred_element_type=jnp.float32)
        y = y + b_ref[...]
        if use_res:
            y = y + res_ref[0]
        o_ref[0] = y.astype(o_ref.dtype)

    return kernel


# ----------------------------------------------------------------------------
# Wrapper
# ----------------------------------------------------------------------------
def mobile_bottleneck_v3(x_nchw, params, *, kernel_size, stride, use_se=True,
                         activation="HardSwish", eps=1e-5, tm=512):
    n, cin, h, w = x_nchw.shape
    k = kernel_size
    pad_sp = (k - 1) // 2
    h_out = (h + 2 * pad_sp - k) // stride + 1
    w_out = (w + 2 * pad_sp - k) // stride + 1

    has_expand = params.get("expand") is not None
    cexp = params["dw"]["w"].shape[0]
    cout = params["project"]["w"].shape[0]
    use_res = (stride == 1 and cin == cout)
    act = {"HardSwish": "hardswish", "ReLU": "relu"}.get(activation, None)

    cin_p = _round_up(cin, 128)
    cexp_p = _round_up(cexp, 128)
    cout_p = _round_up(cout, 128)

    # ---- glue: NCHW -> NHWC, lane-dense channel padding ----
    x_nhwc = jnp.transpose(x_nchw, (0, 2, 3, 1))                 # (N,H,W,Cin)
    hw = h * w
    x_in = jnp.pad(x_nhwc, ((0, 0), (0, 0), (0, 0), (0, cin_p - cin)))
    x_in2d = x_in.reshape(n, hw, cin_p).astype(jnp.bfloat16)

    # ---- fold BN (eval) into weights / biases; pad channels to 128 ----
    a_inputs = [x_in2d]
    a_specs = [pl.BlockSpec((1, hw, cin_p), lambda nb: (nb, 0, 0))]

    if has_expand:
        pe = params["expand"]
        inv = pe["gamma"] / jnp.sqrt(pe["var"] + eps)
        w_e = pe["w"].reshape(cexp, cin).T * inv[None, :]
        b_e = (pe["beta"] - pe["mean"] * inv).reshape(1, cexp)
        w_e = jnp.pad(w_e, ((0, cin_p - cin), (0, cexp_p - cexp))).astype(jnp.bfloat16)
        b_e = jnp.pad(b_e, ((0, 0), (0, cexp_p - cexp))).astype(jnp.float32)
        a_inputs += [w_e, b_e]
        a_specs += [pl.BlockSpec((cin_p, cexp_p), lambda nb: (0, 0)),
                    pl.BlockSpec((1, cexp_p), lambda nb: (0, 0))]

    pdw = params["dw"]
    inv = pdw["gamma"] / jnp.sqrt(pdw["var"] + eps)
    w_d = pdw["w"].reshape(cexp, k * k).T * inv[None, :]           # (k*k, Cexp)
    b_d = (pdw["beta"] - pdw["mean"] * inv).reshape(1, cexp)
    w_d = jnp.pad(w_d, ((0, 0), (0, cexp_p - cexp))).astype(jnp.float32)
    b_d = jnp.pad(b_d, ((0, 0), (0, cexp_p - cexp))).astype(jnp.float32)
    a_inputs += [w_d, b_d]
    a_specs += [pl.BlockSpec((k * k, cexp_p), lambda nb: (0, 0)),
                pl.BlockSpec((1, cexp_p), lambda nb: (0, 0))]

    if use_se:
        pse = params["se"]
        cred = pse["w1"].shape[0]
        cred_p = _round_up(cred, 128)
        w1 = jnp.pad(pse["w1"].T, ((0, cexp_p - cexp), (0, cred_p - cred))).astype(jnp.float32)
        w2 = jnp.pad(pse["w2"].T, ((0, cred_p - cred), (0, cexp_p - cexp))).astype(jnp.float32)
        a_inputs += [w1, w2]
        a_specs += [pl.BlockSpec((cexp_p, cred_p), lambda nb: (0, 0)),
                    pl.BlockSpec((cred_p, cexp_p), lambda nb: (0, 0))]

    dw_kernel = _make_expand_dw_se_kernel(
        h=h, w=w, h_out=h_out, w_out=w_out, k=k, stride=stride, pad=pad_sp,
        cexp_p=cexp_p, act=act, has_expand=has_expand, use_se=use_se)

    y_dw, se = pl.pallas_call(
        dw_kernel,
        out_shape=(jax.ShapeDtypeStruct((n, h_out, w_out, cexp_p), jnp.bfloat16),
                   jax.ShapeDtypeStruct((n, 1, cexp_p), jnp.float32)),
        grid_spec=pltpu.PrefetchScalarGridSpec(
            num_scalar_prefetch=0,
            grid=(n,),
            in_specs=a_specs,
            out_specs=(pl.BlockSpec((1, h_out, w_out, cexp_p),
                                    lambda nb: (nb, 0, 0, 0)),
                       pl.BlockSpec((1, 1, cexp_p), lambda nb: (nb, 0, 0))),
            scratch_shapes=[pltpu.VMEM((h + 2 * pad_sp, w + 2 * pad_sp, cexp_p),
                                       jnp.float32)]),
        compiler_params=pltpu.CompilerParams(
            dimension_semantics=("parallel",),
            vmem_limit_bytes=48 * 1024 * 1024),
    )(*a_inputs)

    # ---- projection: SE scale + 1x1 conv + folded BN + residual ----
    pp = params["project"]
    inv = pp["gamma"] / jnp.sqrt(pp["var"] + eps)
    w_p = pp["w"].reshape(cout, cexp).T * inv[None, :]             # (Cexp, Cout)
    b_p = (pp["beta"] - pp["mean"] * inv).reshape(1, cout)
    w_p = jnp.pad(w_p, ((0, cexp_p - cexp), (0, cout_p - cout))).astype(jnp.bfloat16)
    b_p = jnp.pad(b_p, ((0, 0), (0, cout_p - cout))).astype(jnp.float32)

    hw_out = h_out * w_out
    tm_b = min(tm, _round_up(hw_out, 8))
    hw_pad = _round_up(hw_out, tm_b)
    x_dw = y_dw.reshape(n, hw_out, cexp_p)
    if hw_pad != hw_out:
        x_dw = jnp.pad(x_dw, ((0, 0), (0, hw_pad - hw_out), (0, 0)))

    b_inputs = [x_dw]
    b_specs = [pl.BlockSpec((1, tm_b, cexp_p), lambda nb, i: (nb, i, 0))]
    if use_se:
        b_inputs.append(se)
        b_specs.append(pl.BlockSpec((1, 1, cexp_p), lambda nb, i: (nb, 0, 0)))
    b_inputs += [w_p, b_p]
    b_specs += [pl.BlockSpec((cexp_p, cout_p), lambda nb, i: (0, 0)),
                pl.BlockSpec((1, cout_p), lambda nb, i: (0, 0))]
    if use_res:
        res = jnp.pad(x_nhwc, ((0, 0), (0, 0), (0, 0), (0, cout_p - cin)))
        res = res.reshape(n, hw, cout_p).astype(jnp.float32)
        if hw_pad != hw:
            res = jnp.pad(res, ((0, 0), (0, hw_pad - hw), (0, 0)))
        b_inputs.append(res)
        b_specs.append(pl.BlockSpec((1, tm_b, cout_p), lambda nb, i: (nb, i, 0)))

    proj_kernel = _make_project_kernel(use_se=use_se, use_res=use_res)
    out = pl.pallas_call(
        proj_kernel,
        out_shape=jax.ShapeDtypeStruct((n, hw_pad, cout_p), jnp.float32),
        grid_spec=pltpu.PrefetchScalarGridSpec(
            num_scalar_prefetch=0,
            grid=(n, hw_pad // tm_b),
            in_specs=b_specs,
            out_specs=pl.BlockSpec((1, tm_b, cout_p), lambda nb, i: (nb, i, 0))),
        compiler_params=pltpu.CompilerParams(
            dimension_semantics=("parallel", "parallel"),
            vmem_limit_bytes=48 * 1024 * 1024),
    )(*b_inputs)

    out = out[:, :hw_out, :cout].reshape(n, h_out, w_out, cout)
    return jnp.transpose(out, (0, 3, 1, 2))                        # back to NCHW


# ----------------------------------------------------------------------------
# Pure-JAX reference (PyTorch eval semantics)
# ----------------------------------------------------------------------------
def _reference(x, params, *, kernel_size, stride, use_se, activation, eps=1e-5):
    def act_fn(y, a):
        if a == "HardSwish":
            return y * jnp.clip(y + 3.0, 0.0, 6.0) / 6.0
        if a == "ReLU":
            return jnp.clip(y, 0.0, 6.0)
        return y

    def conv_bn(xx, p, k, s, groups, a):
        pad = (k - 1) // 2
        y = jax.lax.conv_general_dilated(
            xx, p["w"], (s, s), ((pad, pad), (pad, pad)),
            dimension_numbers=("NCHW", "OIHW", "NCHW"),
            feature_group_count=groups)
        inv = p["gamma"] / jnp.sqrt(p["var"] + eps)
        y = y * inv[None, :, None, None] + \
            (p["beta"] - p["mean"] * inv)[None, :, None, None]
        return act_fn(y, a)

    cin = x.shape[1]
    cout = params["project"]["w"].shape[0]
    cexp = params["dw"]["w"].shape[0]
    y = x
    if params.get("expand") is not None:
        y = conv_bn(y, params["expand"], 1, 1, 1, activation)
    y = conv_bn(y, params["dw"], kernel_size, stride, cexp, activation)
    if use_se:
        s = jnp.mean(y, axis=(2, 3))
        s = jnp.maximum(s @ params["se"]["w1"].T, 0.0)
        s = s @ params["se"]["w2"].T
        s = jnp.clip(s + 3.0, 0.0, 6.0) / 6.0
        y = y * s[:, :, None, None]
    y = conv_bn(y, params["project"], 1, 1, 1, None)
    if stride == 1 and cin == cout:
        y = x + y
    return y


if __name__ == "__main__":
    key = jax.random.PRNGKey(0)
    ks = jax.random.split(key, 24)

    N, Cin, H, W = 2, 8, 16, 16
    Cexp, Cout, K, Stride = 24, 8, 3, 1
    Cred = Cexp // 4

    def bn(kg, kb, km, kv, c):
        return dict(
            gamma=jax.random.uniform(kg, (c,), minval=0.5, maxval=1.5),
            beta=jax.random.normal(kb, (c,)) * 0.1,
            mean=jax.random.normal(km, (c,)) * 0.1,
            var=jax.random.uniform(kv, (c,), minval=0.5, maxval=1.5))

    x = jax.random.normal(ks[0], (N, Cin, H, W), dtype=jnp.float32)
    params = {
        "expand": dict(w=jax.random.normal(ks[1], (Cexp, Cin, 1, 1)) * 0.1,
                       **bn(ks[2], ks[3], ks[4], ks[5], Cexp)),
        "dw": dict(w=jax.random.normal(ks[6], (Cexp, 1, K, K)) * 0.1,
                   **bn(ks[7], ks[8], ks[9], ks[10], Cexp)),
        "se": dict(w1=jax.random.normal(ks[11], (Cred, Cexp)) * 0.2,
                   w2=jax.random.normal(ks[12], (Cexp, Cred)) * 0.2),
        "project": dict(w=jax.random.normal(ks[13], (Cout, Cexp, 1, 1)) * 0.1,
                        **bn(ks[14], ks[15], ks[16], ks[17], Cout)),
    }

    out = mobile_bottleneck_v3(x, params, kernel_size=K, stride=Stride,
                               use_se=True, activation="HardSwish")
    out = jax.block_until_ready(out)

    ref = _reference(x, params, kernel_size=K, stride=Stride,
                     use_se=True, activation="HardSwish")
    assert out.shape == (N, Cout, H, W), out.shape
    max_err = float(jnp.max(jnp.abs(out - ref)))
    assert jnp.allclose(out, ref, atol=3e-2, rtol=3e-2), max_err

    print("KERNEL_OK")
</pallas_src>

<mosaic_0001>
module attributes {stable_mosaic.version = 11 : i64} {
  func.func @kernel(%arg0: i32, %arg1: memref<1x256x128xbf16, #tpu.memory_space<vmem>>, %arg2: memref<128x128xbf16, #tpu.memory_space<vmem>>, %arg3: memref<1x128xf32, #tpu.memory_space<vmem>>, %arg4: memref<9x128xf32, #tpu.memory_space<vmem>>, %arg5: memref<1x128xf32, #tpu.memory_space<vmem>>, %arg6: memref<128x128xf32, #tpu.memory_space<vmem>>, %arg7: memref<128x128xf32, #tpu.memory_space<vmem>>, %arg8: memref<1x16x16x128xbf16, #tpu.memory_space<vmem>>, %arg9: memref<1x1x128xf32, #tpu.memory_space<vmem>>, %arg10: memref<18x18x128xf32, #tpu.memory_space<vmem>>) attributes {dimension_semantics = [#tpu.dimension_semantics<parallel>], iteration_bounds = array<i64: 2>, scalar_prefetch = 0 : i64, scratch_operands = 1 : i64, tpu.core_type = #tpu.core_type<tc>, window_params = [{transform_indices = @transform_0, window_bounds = array<i64: 1, 256, 128>}, {pipeline_mode = #tpu.pipeline_mode<synchronous>, transform_indices = @transform_1, window_bounds = array<i64: 128, 128>}, {pipeline_mode = #tpu.pipeline_mode<synchronous>, transform_indices = @transform_2, window_bounds = array<i64: 1, 128>}, {pipeline_mode = #tpu.pipeline_mode<synchronous>, transform_indices = @transform_3, window_bounds = array<i64: 9, 128>}, {pipeline_mode = #tpu.pipeline_mode<synchronous>, transform_indices = @transform_4, window_bounds = array<i64: 1, 128>}, {pipeline_mode = #tpu.pipeline_mode<synchronous>, transform_indices = @transform_5, window_bounds = array<i64: 128, 128>}, {pipeline_mode = #tpu.pipeline_mode<synchronous>, transform_indices = @transform_6, window_bounds = array<i64: 128, 128>}, {transform_indices = @transform_7, window_bounds = array<i64: 1, 16, 16, 128>}, {transform_indices = @transform_8, window_bounds = array<i64: 1, 1, 128>}]} {
    %c0 = arith.constant 0 : index
    %c0_0 = arith.constant 0 : index
    %c0_1 = arith.constant 0 : index
    %0 = vector.load %arg1[%c0, %c0_0, %c0_1] : memref<1x256x128xbf16, #tpu.memory_space<vmem>>, vector<1x256x128xbf16>
    %1 = vector.shape_cast %0 : vector<1x256x128xbf16> to vector<256x128xbf16>
    %c0_2 = arith.constant 0 : index
    %c0_3 = arith.constant 0 : index
    %2 = vector.load %arg2[%c0_2, %c0_3] : memref<128x128xbf16, #tpu.memory_space<vmem>>, vector<128x128xbf16>
    %cst = arith.constant dense<0.000000e+00> : vector<256x128xf32>
    %3 = tpu.matmul %1, %2, %cst {dimension_numbers = #tpu.dot_dimension_numbers<[1], [0], [0], [1], [0, 0, 1, 1], [], []>} : vector<256x128xbf16>, vector<128x128xbf16>, vector<256x128xf32> -> vector<256x128xf32>
    %c0_4 = arith.constant 0 : index
    %c0_5 = arith.constant 0 : index
    %4 = vector.load %arg3[%c0_4, %c0_5] : memref<1x128xf32, #tpu.memory_space<vmem>>, vector<1x128xf32>
    %5 = vector.broadcast %4 : vector<1x128xf32> to vector<256x128xf32>
    %6 = arith.addf %3, %5 : vector<256x128xf32>
    %cst_6 = arith.constant 3.000000e+00 : f32
    %7 = vector.broadcast %cst_6 : f32 to vector<256x128xf32>
    %8 = arith.addf %6, %7 : vector<256x128xf32>
    %cst_7 = arith.constant 0.000000e+00 : f32
    %cst_8 = arith.constant 6.000000e+00 : f32
    %9 = vector.broadcast %cst_7 : f32 to vector<256x128xf32>
    %10 = arith.maximumf %9, %8 : vector<256x128xf32>
    %11 = vector.broadcast %cst_8 : f32 to vector<256x128xf32>
    %12 = arith.minimumf %11, %10 : vector<256x128xf32>
    %13 = arith.mulf %6, %12 : vector<256x128xf32>
    %cst_9 = arith.constant 0.166666672 : f32
    %14 = vector.broadcast %cst_9 : f32 to vector<256x128xf32>
    %15 = arith.mulf %13, %14 : vector<256x128xf32>
    %cst_10 = arith.constant 0.000000e+00 : f32
    %16 = vector.broadcast %cst_10 : f32 to vector<18x18x128xf32>
    %c0_11 = arith.constant 0 : index
    %c0_12 = arith.constant 0 : index
    %c0_13 = arith.constant 0 : index
    %17 = vector.load %arg10[%c0_11, %c0_12, %c0_13] : memref<18x18x128xf32, #tpu.memory_space<vmem>>, vector<18x18x128xf32>
    tpu.vector_store %arg10[%c0_11, %c0_12, %c0_13], %16 {strides = array<i32>} : memref<18x18x128xf32, #tpu.memory_space<vmem>>, vector<18x18x128xf32>,
    %18 = vector.shape_cast %15 : vector<256x128xf32> to vector<16x16x128xf32>
    %c1 = arith.constant 1 : index
    %c1_14 = arith.constant 1 : index
    %c0_15 = arith.constant 0 : index
    %19 = vector.load %arg10[%c1, %c1_14, %c0_15] : memref<18x18x128xf32, #tpu.memory_space<vmem>>, vector<16x16x128xf32>
    tpu.vector_store %arg10[%c1, %c1_14, %c0_15], %18 {strides = array<i32>} : memref<18x18x128xf32, #tpu.memory_space<vmem>>, vector<16x16x128xf32>,
    %c0_16 = arith.constant 0 : index
    %c0_17 = arith.constant 0 : index
    %20 = vector.load %arg4[%c0_16, %c0_17] : memref<9x128xf32, #tpu.memory_space<vmem>>, vector<9x128xf32>
    %c0_18 = arith.constant 0 : index
    %c0_19 = arith.constant 0 : index
    %21 = vector.load %arg5[%c0_18, %c0_19] : memref<1x128xf32, #tpu.memory_space<vmem>>, vector<1x128xf32>
    %22 = vector.shape_cast %21 : vector<1x128xf32> to vector<1x1x128xf32>
    %cst_20 = arith.constant 0.000000e+00 : f32
    %23 = vector.broadcast %cst_20 : f32 to vector<16x16x128xf32>
    %24 = vector.extract_strided_slice %20 {offsets = [0, 0], sizes = [1, 128], strides = [1, 1]} : vector<9x128xf32> to vector<1x128xf32>
    %25 = vector.shape_cast %24 : vector<1x128xf32> to vector<1x1x128xf32>
    %c0_21 = arith.constant 0 : index
    %c0_22 = arith.constant 0 : index
    %c0_23 = arith.constant 0 : index
    %26 = vector.load %arg10[%c0_21, %c0_22, %c0_23] : memref<18x18x128xf32, #tpu.memory_space<vmem>>, vector<16x16x128xf32>
    %27 = vector.broadcast %25 : vector<1x1x128xf32> to vector<16x16x128xf32>
    %28 = arith.mulf %26, %27 : vector<16x16x128xf32>
    %29 = arith.addf %23, %28 : vector<16x16x128xf32>
    %30 = vector.extract_strided_slice %20 {offsets = [1, 0], sizes = [1, 128], strides = [1, 1]} : vector<9x128xf32> to vector<1x128xf32>
    %31 = vector.shape_cast %30 : vector<1x128xf32> to vector<1x1x128xf32>
    %c0_24 = arith.constant 0 : index
    %c1_25 = arith.constant 1 : index
    %c0_26 = arith.constant 0 : index
    %32 = vector.load %arg10[%c0_24, %c1_25, %c0_26] : memref<18x18x128xf32, #tpu.memory_space<vmem>>, vector<16x16x128xf32>
    %33 = vector.broadcast %31 : vector<1x1x128xf32> to vector<16x16x128xf32>
    %34 = arith.mulf %32, %33 : vector<16x16x128xf32>
    %35 = arith.addf %29, %34 : vector<16x16x128xf32>
    %36 = vector.extract_strided_slice %20 {offsets = [2, 0], sizes = [1, 128], strides = [1, 1]} : vector<9x128xf32> to vector<1x128xf32>
    %37 = vector.shape_cast %36 : vector<1x128xf32> to vector<1x1x128xf32>
    %c0_27 = arith.constant 0 : index
    %c2 = arith.constant 2 : index
    %c0_28 = arith.constant 0 : index
    %38 = vector.load %arg10[%c0_27, %c2, %c0_28] : memref<18x18x128xf32, #tpu.memory_space<vmem>>, vector<16x16x128xf32>
    %39 = vector.broadcast %37 : vector<1x1x128xf32> to vector<16x16x128xf32>
    %40 = arith.mulf %38, %39 : vector<16x16x128xf32>
    %41 = arith.addf %35, %40 : vector<16x16x128xf32>
    %42 = vector.extract_strided_slice %20 {offsets = [3, 0], sizes = [1, 128], strides = [1, 1]} : vector<9x128xf32> to vector<1x128xf32>
    %43 = vector.shape_cast %42 : vector<1x128xf32> to vector<1x1x128xf32>
    %c1_29 = arith.constant 1 : index
    %c0_30 = arith.constant 0 : index
    %c0_31 = arith.constant 0 : index
    %44 = vector.load %arg10[%c1_29, %c0_30, %c0_31] : memref<18x18x128xf32, #tpu.memory_space<vmem>>, vector<16x16x128xf32>
    %45 = vector.broadcast %43 : vector<1x1x128xf32> to vector<16x16x128xf32>
    %46 = arith.mulf %44, %45 : vector<16x16x128xf32>
    %47 = arith.addf %41, %46 : vector<16x16x128xf32>
    %48 = vector.extract_strided_slice %20 {offsets = [4, 0], sizes = [1, 128], strides = [1, 1]} : vector<9x128xf32> to vector<1x128xf32>
    %49 = vector.shape_cast %48 : vector<1x128xf32> to vector<1x1x128xf32>
    %c1_32 = arith.constant 1 : index
    %c1_33 = arith.constant 1 : index
    %c0_34 = arith.constant 0 : index
    %50 = vector.load %arg10[%c1_32, %c1_33, %c0_34] : memref<18x18x128xf32, #tpu.memory_space<vmem>>, vector<16x16x128xf32>
    %51 = vector.broadcast %49 : vector<1x1x128xf32> to vector<16x16x128xf32>
    %52 = arith.mulf %50, %51 : vector<16x16x128xf32>
    %53 = arith.addf %47, %52 : vector<16x16x128xf32>
    %54 = vector.extract_strided_slice %20 {offsets = [5, 0], sizes = [1, 128], strides = [1, 1]} : vector<9x128xf32> to vector<1x128xf32>
    %55 = vector.shape_cast %54 : vector<1x128xf32> to vector<1x1x128xf32>
    %c1_35 = arith.constant 1 : index
    %c2_36 = arith.constant 2 : index
    %c0_37 = arith.constant 0 : index
    %56 = vector.load %arg10[%c1_35, %c2_36, %c0_37] : memref<18x18x128xf32, #tpu.memory_space<vmem>>, vector<16x16x128xf32>
    %57 = vector.broadcast %55 : vector<1x1x128xf32> to vector<16x16x128xf32>
    %58 = arith.mulf %56, %57 : vector<16x16x128xf32>
    %59 = arith.addf %53, %58 : vector<16x16x128xf32>
    %60 = vector.extract_strided_slice %20 {offsets = [6, 0], sizes = [1, 128], strides = [1, 1]} : vector<9x128xf32> to vector<1x128xf32>
    %61 = vector.shape_cast %60 : vector<1x128xf32> to vector<1x1x128xf32>
    %c2_38 = arith.constant 2 : index
    %c0_39 = arith.constant 0 : index
    %c0_40 = arith.constant 0 : index
    %62 = vector.load %arg10[%c2_38, %c0_39, %c0_40] : memref<18x18x128xf32, #tpu.memory_space<vmem>>, vector<16x16x128xf32>
    %63 = vector.broadcast %61 : vector<1x1x128xf32> to vector<16x16x128xf32>
    %64 = arith.mulf %62, %63 : vector<16x16x128xf32>
    %65 = arith.addf %59, %64 : vector<16x16x128xf32>
    %66 = vector.extract_strided_slice %20 {offsets = [7, 0], sizes = [1, 128], strides = [1, 1]} : vector<9x128xf32> to vector<1x128xf32>
    %67 = vector.shape_cast %66 : vector<1x128xf32> to vector<1x1x128xf32>
    %c2_41 = arith.constant 2 : index
    %c1_42 = arith.constant 1 : index
    %c0_43 = arith.constant 0 : index
    %68 = vector.load %arg10[%c2_41, %c1_42, %c0_43] : memref<18x18x128xf32, #tpu.memory_space<vmem>>, vector<16x16x128xf32>
    %69 = vector.broadcast %67 : vector<1x1x128xf32> to vector<16x16x128xf32>
    %70 = arith.mulf %68, %69 : vector<16x16x128xf32>
    %71 = arith.addf %65, %70 : vector<16x16x128xf32>
    %72 = vector.extract_strided_slice %20 {offsets = [8, 0], sizes = [1, 128], strides = [1, 1]} : vector<9x128xf32> to vector<1x128xf32>
    %73 = vector.shape_cast %72 : vector<1x128xf32> to vector<1x1x128xf32>
    %c2_44 = arith.constant 2 : index
    %c2_45 = arith.constant 2 : index
    %c0_46 = arith.constant 0 : index
    %74 = vector.load %arg10[%c2_44, %c2_45, %c0_46] : memref<18x18x128xf32, #tpu.memory_space<vmem>>, vector<16x16x128xf32>
    %75 = vector.broadcast %73 : vector<1x1x128xf32> to vector<16x16x128xf32>
    %76 = arith.mulf %74, %75 : vector<16x16x128xf32>
    %77 = arith.addf %71, %76 : vector<16x16x128xf32>
    %78 = vector.broadcast %22 : vector<1x1x128xf32> to vector<16x16x128xf32>
    %79 = arith.addf %77, %78 : vector<16x16x128xf32>
    %cst_47 = arith.constant 3.000000e+00 : f32
    %80 = vector.broadcast %cst_47 : f32 to vector<16x16x128xf32>
    %81 = arith.addf %79, %80 : vector<16x16x128xf32>
    %cst_48 = arith.constant 0.000000e+00 : f32
    %cst_49 = arith.constant 6.000000e+00 : f32
    %82 = vector.broadcast %cst_48 : f32 to vector<16x16x128xf32>
    %83 = arith.maximumf %82, %81 : vector<16x16x128xf32>
    %84 = vector.broadcast %cst_49 : f32 to vector<16x16x128xf32>
    %85 = arith.minimumf %84, %83 : vector<16x16x128xf32>
    %86 = arith.mulf %79, %85 : vector<16x16x128xf32>
    %cst_50 = arith.constant 0.166666672 : f32
    %87 = vector.broadcast %cst_50 : f32 to vector<16x16x128xf32>
    %88 = arith.mulf %86, %87 : vector<16x16x128xf32>
    %89 = arith.truncf %88 : vector<16x16x128xf32> to vector<16x16x128xbf16>
    %c0_51 = arith.constant 0 : index
    %c0_52 = arith.constant 0 : index
    %c0_53 = arith.constant 0 : index
    %c0_54 = arith.constant 0 : index
    %90 = vector.load %arg8[%c0_51, %c0_52, %c0_53, %c0_54] : memref<1x16x16x128xbf16, #tpu.memory_space<vmem>>, vector<1x16x16x128xbf16>
    %91 = vector.shape_cast %90 : vector<1x16x16x128xbf16> to vector<16x16x128xbf16>
    %92 = vector.shape_cast %89 : vector<16x16x128xbf16> to vector<1x16x16x128xbf16>
    tpu.vector_store %arg8[%c0_51, %c0_52, %c0_53, %c0_54], %92 {strides = array<i32>} : memref<1x16x16x128xbf16, #tpu.memory_space<vmem>>, vector<1x16x16x128xbf16>,
    %93 = vector.shape_cast %88 : vector<16x16x128xf32> to vector<256x128xf32>
    %cst_55 = arith.constant dense<0.000000e+00> : vector<128xf32>
    %94 = vector.multi_reduction <add>, %93, %cst_55 [0] : vector<256x128xf32> to vector<128xf32>
    %95 = vector.shape_cast %94 : vector<128xf32> to vector<1x128xf32>
    %cst_56 = arith.constant 3.906250e-03 : f32
    %96 = vector.broadcast %cst_56 : f32 to vector<1x128xf32>
    %97 = arith.mulf %95, %96 : vector<1x128xf32>
    %c0_57 = arith.constant 0 : index
    %c0_58 = arith.constant 0 : index
    %98 = vector.load %arg6[%c0_57, %c0_58] : memref<128x128xf32, #tpu.memory_space<vmem>>, vector<128x128xf32>
    %cst_59 = arith.constant dense<0.000000e+00> : vector<1x128xf32>
    %99 = tpu.matmul %97, %98, %cst_59 {dimension_numbers = #tpu.dot_dimension_numbers<[1], [0], [0], [1], [0, 0, 1, 1], [], []>} : vector<1x128xf32>, vector<128x128xf32>, vector<1x128xf32> -> vector<1x128xf32>
    %cst_60 = arith.constant 0.000000e+00 : f32
    %100 = vector.broadcast %cst_60 : f32 to vector<1x128xf32>
    %101 = arith.maximumf %99, %100 : vector<1x128xf32>
    %c0_61 = arith.constant 0 : index
    %c0_62 = arith.constant 0 : index
    %102 = vector.load %arg7[%c0_61, %c0_62] : memref<128x128xf32, #tpu.memory_space<vmem>>, vector<128x128xf32>
    %cst_63 = arith.constant dense<0.000000e+00> : vector<1x128xf32>
    %103 = tpu.matmul %101, %102, %cst_63 {dimension_numbers = #tpu.dot_dimension_numbers<[1], [0], [0], [1], [0, 0, 1, 1], [], []>} : vector<1x128xf32>, vector<128x128xf32>, vector<1x128xf32> -> vector<1x128xf32>
    %cst_64 = arith.constant 3.000000e+00 : f32
    %104 = vector.broadcast %cst_64 : f32 to vector<1x128xf32>
    %105 = arith.addf %103, %104 : vector<1x128xf32>
    %cst_65 = arith.constant 0.000000e+00 : f32
    %cst_66 = arith.constant 6.000000e+00 : f32
    %106 = vector.broadcast %cst_65 : f32 to vector<1x128xf32>
    %107 = arith.maximumf %106, %105 : vector<1x128xf32>
    %108 = vector.broadcast %cst_66 : f32 to vector<1x128xf32>
    %109 = arith.minimumf %108, %107 : vector<1x128xf32>
    %cst_67 = arith.constant 0.166666672 : f32
    %110 = vector.broadcast %cst_67 : f32 to vector<1x128xf32>
    %111 = arith.mulf %109, %110 : vector<1x128xf32>
    %c0_68 = arith.constant 0 : index
    %c0_69 = arith.constant 0 : index
    %c0_70 = arith.constant 0 : index
    %112 = vector.load %arg9[%c0_68, %c0_69, %c0_70] : memref<1x1x128xf32, #tpu.memory_space<vmem>>, vector<1x1x128xf32>
    %113 = vector.shape_cast %112 : vector<1x1x128xf32> to vector<1x128xf32>
    %114 = vector.shape_cast %111 : vector<1x128xf32> to vector<1x1x128xf32>
    tpu.vector_store %arg9[%c0_68, %c0_69, %c0_70], %114 {strides = array<i32>} : memref<1x1x128xf32, #tpu.memory_space<vmem>>, vector<1x1x128xf32>,
    return
  }
  func.func @transform_0(%arg0: i32) -> (i32, i32, i32) {
    %c0_i32 = arith.constant 0 : i32
    %c0_i32_0 = arith.constant 0 : i32
    %c0_i32_1 = arith.constant 0 : i32
    return %arg0, %c0_i32, %c0_i32_0 : i32, i32, i32
  }
  func.func @transform_1(%arg0: i32) -> (i32, i32) {
    %c0_i32 = arith.constant 0 : i32
    %c0_i32_0 = arith.constant 0 : i32
    %c0_i32_1 = arith.constant 0 : i32
    return %c0_i32, %c0_i32_0 : i32, i32
  }
  func.func @transform_2(%arg0: i32) -> (i32, i32) {
    %c0_i32 = arith.constant 0 : i32
    %c0_i32_0 = arith.constant 0 : i32
    %c0_i32_1 = arith.constant 0 : i32
    return %c0_i32, %c0_i32_0 : i32, i32
  }
  func.func @transform_3(%arg0: i32) -> (i32, i32) {
    %c0_i32 = arith.constant 0 : i32
    %c0_i32_0 = arith.constant 0 : i32
    %c0_i32_1 = arith.constant 0 : i32
    return %c0_i32, %c0_i32_0 : i32, i32
  }
  func.func @transform_4(%arg0: i32) -> (i32, i32) {
    %c0_i32 = arith.constant 0 : i32
    %c0_i32_0 = arith.constant 0 : i32
    %c0_i32_1 = arith.constant 0 : i32
    return %c0_i32, %c0_i32_0 : i32, i32
  }
  func.func @transform_5(%arg0: i32) -> (i32, i32) {
    %c0_i32 = arith.constant 0 : i32
    %c0_i32_0 = arith.constant 0 : i32
    %c0_i32_1 = arith.constant 0 : i32
    return %c0_i32, %c0_i32_0 : i32, i32
  }
  func.func @transform_6(%arg0: i32) -> (i32, i32) {
    %c0_i32 = arith.constant 0 : i32
    %c0_i32_0 = arith.constant 0 : i32
    %c0_i32_1 = arith.constant 0 : i32
    return %c0_i32, %c0_i32_0 : i32, i32
  }
  func.func @transform_7(%arg0: i32) -> (i32, i32, i32, i32) {
    %c0_i32 = arith.constant 0 : i32
    %c0_i32_0 = arith.constant 0 : i32
    %c0_i32_1 = arith.constant 0 : i32
    %c0_i32_2 = arith.constant 0 : i32
    return %arg0, %c0_i32, %c0_i32_0, %c0_i32_1 : i32, i32, i32, i32
  }
  func.func @transform_8(%arg0: i32) -> (i32, i32, i32) {
    %c0_i32 = arith.constant 0 : i32
    %c0_i32_0 = arith.constant 0 : i32
    %c0_i32_1 = arith.constant 0 : i32
    return %arg0, %c0_i32, %c0_i32_0 : i32, i32, i32
  }
}

</mosaic_0001>

<llo_original>
// kernel: tpu_custom_call.1
$region0: #{tpu_custom_call.1}
  #allocation0 [shape = 'u32[]', space=smem, size = 0x4, offset = 0x4, fixed_abs, tag = 'smem constant byte address 0x4 - core index']
  #allocation1 [shape = 'u32[72,128]{1,0:T(1,128)}', space=vmem, size = 0x9000, scoped, tag = 'internal scratch']
  #allocation2 [shape = 'f32[18,18,128]{2,1,0:T(8,128)}', space=vmem, size = 0x36000, scoped, tag = 'scratch operand']
  %s0 = inlined_call_operand.hbm [shape: bf16[2,256,128], index: 0, kind: input, shape index: {}]
  %s1 = inlined_call_operand.hbm [shape: bf16[128,128], index: 1, kind: input, shape index: {}]
  %s2 = inlined_call_operand.vmem [shape: f32[1,128], index: 2, kind: input, shape index: {}]
  %s3 = inlined_call_operand.hbm [shape: f32[9,128], index: 3, kind: input, shape index: {}]
  %s4 = inlined_call_operand.vmem [shape: f32[1,128], index: 4, kind: input, shape index: {}]
  %s5 = inlined_call_operand.hbm [shape: f32[128,128], index: 5, kind: input, shape index: {}]
  %s6 = inlined_call_operand.hbm [shape: f32[128,128], index: 6, kind: input, shape index: {}]
  %s7 = inlined_call_operand.hbm [shape: bf16[2,16,16,128], index: 7, kind: output, shape index: {0}]
  %s8 = inlined_call_operand.hbm [shape: f32[2,1,128], index: 8, kind: output, shape index: {1}]
  %9 = xla_tuple %s7, %s8
  %s10 = sld [smem:[#allocation0]]
  $region89: #{tpu_custom_call.1} parent=0
    _
  %s12 = ssub.s32 1, %s10
  %s13 = scalar_select 0, %s12, %s10
  $region1: #{tpu_custom_call.1} parent=0
    #allocation3 [shape = 'u8[131072]{0}', space=vmem, size = 0x20000, scoped, tag = 'input window, operand 0']
    #allocation4 [shape = 's32[2]{0}', space=sflag, size = 0x8, scoped, tag = 'scoped memory for tpu_custom_call.1']
    #allocation5 [shape = 's32[2]{0}', space=sflag, size = 0x8, scoped, tag = 'scoped memory for tpu_custom_call.1']
    #allocation6 [shape = 'u8[32768]{0}', space=vmem, size = 0x8000, scoped, tag = 'input window, operand 1, single buffered']
    #allocation7 [shape = 's32[1]{0}', space=sflag, size = 0x4, scoped, tag = 'scoped memory for tpu_custom_call.1']
    #allocation8 [shape = 'u8[8192]{0}', space=vmem, size = 0x2000, scoped, tag = 'input window, operand 3, single buffered']
    #allocation9 [shape = 'u8[65536]{0}', space=vmem, size = 0x10000, scoped, tag = 'input window, operand 5, single buffered']
    #allocation10 [shape = 's32[1]{0}', space=sflag, size = 0x4, scoped, tag = 'scoped memory for tpu_custom_call.1']
    #allocation11 [shape = 'u8[65536]{0}', space=vmem, size = 0x10000, scoped, tag = 'input window, operand 6, single buffered']
    #allocation12 [shape = 'u8[131072]{0}', space=vmem, size = 0x20000, scoped, tag = 'output window, operand 0']
    #allocation13 [shape = 'u8[1024]{0}', space=vmem, size = 0x400, scoped, tag = 'output window, operand 1']
    #allocation14 [shape = 's32[2]{0}', space=sflag, size = 0x8, scoped, tag = 'scoped memory for tpu_custom_call.1']
    %14 = vsyncpa [#allocation4], 0
    %s15 = scalar_lea.sflag [#allocation4], 1
    %16 = vsyncpa %s15, 0
    %17 = vsyncpa [#allocation7], 0
    %18 = vsyncpa [#allocation10], 0
    %19 = vsyncpa [#allocation5], 0
    %s20 = scalar_lea.sflag [#allocation5], 1
    %21 = vsyncpa %s20, 0
    %22 = vsyncpa [#allocation14], 0
    %s23 = scalar_lea.sflag [#allocation14], 1
    %24 = vsyncpa %s23, 0
    loop: start=0, step=1, limit=4
    $region2: #{tpu_custom_call.1} parent=1 // loop_pre_header
      _
    $region3: #{tpu_custom_call.1} parent=1 // loop_header
      %s26 = sphi 0, %s30
      %p27 = scmp.ge.s32.totalorder %s26, 4
      %s36 = sphi 0, %s38
      %s39 = sphi 0, %s36
      %s40 = sphi 0, %s39
      %s56 = sphi 0, %s40
      %s60 = sphi 0, %s60
      %s62 = sphi 0, %s60
      %s63 = sphi 0, %s62
      %s77 = sphi 0, %s63
      %s81 = sphi 0, %s81
      %s83 = sphi 0, %s81
      %s84 = sphi 0, %s83
      %s98 = sphi 0, %s84
      %s102 = sphi 0, %s102
      %s104 = sphi 0, %s102
      %s105 = sphi 0, %s104
      %s119 = sphi 0, %s105
      %s123 = sphi 0, %s123
      %s125 = sphi 0, %s123
      %s126 = sphi 0, %s125
      %s140 = sphi 0, %s126
      %s144 = sphi 0, %s144
      %s146 = sphi 0, %s144
      %s147 = sphi 0, %s146
      %s161 = sphi 0, %s147
      %s165 = sphi 0, %s165
      %s167 = sphi 0, %s165
      %s168 = sphi 0, %s167
      %s182 = sphi 0, %s168
      %s188 = sphi 0, %s190
      %s191 = sphi 0, %s188
      %s192 = sphi 0, %s191
      %s208 = sphi 0, %s192
      %s214 = sphi 0, %s216
      %s217 = sphi 0, %s214
      %s218 = sphi 0, %s217
      %s234 = sphi 0, %s218
    $region4: #{tpu_custom_call.1} parent=1 // loop_header_branch
      %29 = sbr.rel (%p27) target = $region8
    $region5: #{tpu_custom_call.1} parent=1 // loop_body
      %s31 = ssub.s32 %s26, 1
      %s32 = ssub.s32 %s26, 2
      %s33 = sadd.s32 %s26, 1
      %s34 = ssub.s32 %s26, %s33
      %p35 = scmp.eq.s32.totalorder %s34, 0
      %s37 = sadd.s32 %s36, 1
      %s38 = scalar_select %p35, %s36, %s37
      %p41 = pneg %p35
      %p42 = scmp.eq.s32.totalorder %s26, 1
      %p43 = por %p41, %p42
      %p44 = scmp.ne.s32.totalorder %s36, %s39
      %p45 = scmp.eq.s32.totalorder %s26, 0
      %p46 = por %p44, %p45
      %p47 = scmp.ne.s32.totalorder %s36, %s39
      %p48 = scmp.eq.s32.totalorder %s31, 1
      %p49 = por %p47, %p48
      %p50 = scmp.ne.s32.totalorder %s39, %s40
      %p51 = scmp.eq.s32.totalorder %s31, 0
      %p52 = por %p50, %p51
      %p53 = scmp.ne.s32.totalorder %s39, %s40
      %p54 = scmp.eq.s32.totalorder %s32, 1
      %p55 = por %p53, %p54
      %p57 = scmp.ne.s32.totalorder %s40, %s56
      %p58 = scmp.eq.s32.totalorder %s32, 0
      %p59 = por %p57, %p58
      %s61 = sadd.s32 %s60, 1
      %p64 = scmp.eq.s32.totalorder %s26, 1
      %p65 = scmp.ne.s32.totalorder %s60, %s62
      %p66 = scmp.eq.s32.totalorder %s26, 0
      %p67 = por %p65, %p66
      %p68 = scmp.ne.s32.totalorder %s60, %s62
      %p69 = scmp.eq.s32.totalorder %s31, 1
      %p70 = por %p68, %p69
      %p71 = scmp.ne.s32.totalorder %s62, %s63
      %p72 = scmp.eq.s32.totalorder %s31, 0
      %p73 = por %p71, %p72
      %p74 = scmp.ne.s32.totalorder %s62, %s63
      %p75 = scmp.eq.s32.totalorder %s32, 1
      %p76 = por %p74, %p75
      %p78 = scmp.ne.s32.totalorder %s63, %s77
      %p79 = scmp.eq.s32.totalorder %s32, 0
      %p80 = por %p78, %p79
      %s82 = sadd.s32 %s81, 1
      %p85 = scmp.eq.s32.totalorder %s26, 1
      %p86 = scmp.ne.s32.totalorder %s81, %s83
      %p87 = scmp.eq.s32.totalorder %s26, 0
      %p88 = por %p86, %p87
      %p89 = scmp.ne.s32.totalorder %s81, %s83
      %p90 = scmp.eq.s32.totalorder %s31, 1
      %p91 = por %p89, %p90
      %p92 = scmp.ne.s32.totalorder %s83, %s84
      %p93 = scmp.eq.s32.totalorder %s31, 0
      %p94 = por %p92, %p93
      %p95 = scmp.ne.s32.totalorder %s83, %s84
      %p96 = scmp.eq.s32.totalorder %s32, 1
      %p97 = por %p95, %p96
      %p99 = scmp.ne.s32.totalorder %s84, %s98
      %p100 = scmp.eq.s32.totalorder %s32, 0
      %p101 = por %p99, %p100
      %s103 = sadd.s32 %s102, 1
      %p106 = scmp.eq.s32.totalorder %s26, 1
      %p107 = scmp.ne.s32.totalorder %s102, %s104
      %p108 = scmp.eq.s32.totalorder %s26, 0
      %p109 = por %p107, %p108
      %p110 = scmp.ne.s32.totalorder %s102, %s104
      %p111 = scmp.eq.s32.totalorder %s31, 1
      %p112 = por %p110, %p111
      %p113 = scmp.ne.s32.totalorder %s104, %s105
      %p114 = scmp.eq.s32.totalorder %s31, 0
      %p115 = por %p113, %p114
      %p116 = scmp.ne.s32.totalorder %s104, %s105
      %p117 = scmp.eq.s32.totalorder %s32, 1
      %p118 = por %p116, %p117
      %p120 = scmp.ne.s32.totalorder %s105, %s119
      %p121 = scmp.eq.s32.totalorder %s32, 0
      %p122 = por %p120, %p121
      %s124 = sadd.s32 %s123, 1
      %p127 = scmp.eq.s32.totalorder %s26, 1
      %p128 = scmp.ne.s32.totalorder %s123, %s125
      %p129 = scmp.eq.s32.totalorder %s26, 0
      %p130 = por %p128, %p129
      %p131 = scmp.ne.s32.totalorder %s123, %s125
      %p132 = scmp.eq.s32.totalorder %s31, 1
      %p133 = por %p131, %p132
      %p134 = scmp.ne.s32.totalorder %s125, %s126
      %p135 = scmp.eq.s32.totalorder %s31, 0
      %p136 = por %p134, %p135
      %p137 = scmp.ne.s32.totalorder %s125, %s126
      %p138 = scmp.eq.s32.totalorder %s32, 1
      %p139 = por %p137, %p138
      %p141 = scmp.ne.s32.totalorder %s126, %s140
      %p142 = scmp.eq.s32.totalorder %s32, 0
      %p143 = por %p141, %p142
      %s145 = sadd.s32 %s144, 1
      %p148 = scmp.eq.s32.totalorder %s26, 1
      %p149 = scmp.ne.s32.totalorder %s144, %s146
      %p150 = scmp.eq.s32.totalorder %s26, 0
      %p151 = por %p149, %p150
      %p152 = scmp.ne.s32.totalorder %s144, %s146
      %p153 = scmp.eq.s32.totalorder %s31, 1
      %p154 = por %p152, %p153
      %p155 = scmp.ne.s32.totalorder %s146, %s147
      %p156 = scmp.eq.s32.totalorder %s31, 0
      %p157 = por %p155, %p156
      %p158 = scmp.ne.s32.totalorder %s146, %s147
      %p159 = scmp.eq.s32.totalorder %s32, 1
      %p160 = por %p158, %p159
      %p162 = scmp.ne.s32.totalorder %s147, %s161
      %p163 = scmp.eq.s32.totalorder %s32, 0
      %p164 = por %p162, %p163
      %s166 = sadd.s32 %s165, 1
      %p169 = scmp.eq.s32.totalorder %s26, 1
      %p170 = scmp.ne.s32.totalorder %s165, %s167
      %p171 = scmp.eq.s32.totalorder %s26, 0
      %p172 = por %p170, %p171
      %p173 = scmp.ne.s32.totalorder %s165, %s167
      %p174 = scmp.eq.s32.totalorder %s31, 1
      %p175 = por %p173, %p174
      %p176 = scmp.ne.s32.totalorder %s167, %s168
      %p177 = scmp.eq.s32.totalorder %s31, 0
      %p178 = por %p176, %p177
      %p179 = scmp.ne.s32.totalorder %s167, %s168
      %p180 = scmp.eq.s32.totalorder %s32, 1
      %p181 = por %p179, %p180
      %p183 = scmp.ne.s32.totalorder %s168, %s182
      %p184 = scmp.eq.s32.totalorder %s32, 0
      %p185 = por %p183, %p184
      %s186 = ssub.s32 %s26, %s33
      %p187 = scmp.eq.s32.totalorder %s186, 0
      %s189 = sadd.s32 %s188, 1
      %s190 = scalar_select %p187, %s188, %s189
      %p193 = pneg %p187
      %p194 = scmp.eq.s32.totalorder %s26, 1
      %p195 = por %p193, %p194
      %p196 = scmp.ne.s32.totalorder %s188, %s191
      %p197 = scmp.eq.s32.totalorder %s26, 0
      %p198 = por %p196, %p197
      %p199 = scmp.ne.s32.totalorder %s188, %s191
      %p200 = scmp.eq.s32.totalorder %s31, 1
      %p201 = por %p199, %p200
      %p202 = scmp.ne.s32.totalorder %s191, %s192
      %p203 = scmp.eq.s32.totalorder %s31, 0
      %p204 = por %p202, %p203
      %p205 = scmp.ne.s32.totalorder %s191, %s192
      %p206 = scmp.eq.s32.totalorder %s32, 1
      %p207 = por %p205, %p206
      %p209 = scmp.ne.s32.totalorder %s192, %s208
      %p210 = scmp.eq.s32.totalorder %s32, 0
      %p211 = por %p209, %p210
      %s212 = ssub.s32 %s26, %s33
      %p213 = scmp.eq.s32.totalorder %s212, 0
      %s215 = sadd.s32 %s214, 1
      %s216 = scalar_select %p213, %s214, %s215
      %p219 = pneg %p213
      %p220 = scmp.eq.s32.totalorder %s26, 1
      %p221 = por %p219, %p220
      %p222 = scmp.ne.s32.totalorder %s214, %s217
      %p223 = scmp.eq.s32.totalorder %s26, 0
      %p224 = por %p222, %p223
      %p225 = scmp.ne.s32.totalorder %s214, %s217
      %p226 = scmp.eq.s32.totalorder %s31, 1
      %p227 = por %p225, %p226
      %p228 = scmp.ne.s32.totalorder %s217, %s218
      %p229 = scmp.eq.s32.totalorder %s31, 0
      %p230 = por %p228, %p229
      %p231 = scmp.ne.s32.totalorder %s217, %s218
      %p232 = scmp.eq.s32.totalorder %s32, 1
      %p233 = por %p231, %p232
      %p235 = scmp.ne.s32.totalorder %s218, %s234
      %p236 = scmp.eq.s32.totalorder %s32, 0
      %p237 = por %p235, %p236
      %p238 = scmp.le.s32.totalorder 1, %s26
      %p239 = scmp.lt.s32.totalorder %s26, 3
      %p240 = pnand %p238, %p239
      %p241 = pneg %p240
      // Predicated region
      $region9: #{tpu_custom_call.1} parent=5 // pred_check
        _
      $region10: #{tpu_custom_call.1} parent=5 // pred_check_branch
        %243 = sbr.rel (%p240) target = $region12
      $region11: #{tpu_custom_call.1} parent=5 // pred_region
        %s244 = ssub.s32 %s26, 1
        // Predicated region
        $region13: #{tpu_custom_call.1} parent=11 // pred_check
          %p245 = pneg %p73
        $region14: #{tpu_custom_call.1} parent=11 // pred_check_branch
          %247 = sbr.rel (%p245) target = $region16
        $region15: #{tpu_custom_call.1} parent=11 // pred_region
          %249 = vsyncadd [#allocation7], 0
          %s250 = sshll.u32 %s1, 4
          %s251 = int_to_ptr.hbm [resolvable:$true] %s250
          %s252 = sshll.u32 [#allocation6], 4
          %s253 = int_to_ptr.vmem [resolvable:$true] %s252
          %258 = dma.hbm_to_vmem [thread:$0]  %s251, 1024, %s253, [#allocation7], 64, 64, 4
        $region16: #{tpu_custom_call.1} parent=11 // pred_fallthru
          _
        // Predicated region
        $region17: #{tpu_custom_call.1} parent=11 // pred_check
          %p259 = pneg %p94
        $region18: #{tpu_custom_call.1} parent=11 // pred_check_branch
          %261 = sbr.rel (%p259) target = $region20
        $region19: #{tpu_custom_call.1} parent=11 // pred_region
          _
        $region20: #{tpu_custom_call.1} parent=11 // pred_fallthru
          _
        // Predicated region
        $region21: #{tpu_custom_call.1} parent=11 // pred_check
          %p262 = pneg %p115
        $region22: #{tpu_custom_call.1} parent=11 // pred_check_branch
          %264 = sbr.rel (%p262) target = $region24
        $region23: #{tpu_custom_call.1} parent=11 // pred_region
          %266 = vsyncadd [#allocation7], 0
          %s267 = sshll.u32 %s3, 4
          %s268 = int_to_ptr.hbm [resolvable:$true] %s267
          %s269 = sshll.u32 [#allocation8], 4
          %s270 = int_to_ptr.vmem [resolvable:$true] %s269
          %275 = dma.hbm_to_vmem [thread:$0]  %s268, 256, %s270, [#allocation7], 128, 128, 8
        $region24: #{tpu_custom_call.1} parent=11 // pred_fallthru
          _
        // Predicated region
        $region25: #{tpu_custom_call.1} parent=11 // pred_check
          %p276 = pneg %p136
        $region26: #{tpu_custom_call.1} parent=11 // pred_check_branch
          %278 = sbr.rel (%p276) target = $region28
        $region27: #{tpu_custom_call.1} parent=11 // pred_region
          _
        $region28: #{tpu_custom_call.1} parent=11 // pred_fallthru
          _
        // Predicated region
        $region29: #{tpu_custom_call.1} parent=11 // pred_check
          %p279 = pneg %p157
        $region30: #{tpu_custom_call.1} parent=11 // pred_check_branch
          %281 = sbr.rel (%p279) target = $region32
        $region31: #{tpu_custom_call.1} parent=11 // pred_region
          %283 = vsyncadd [#allocation10], 0
          %s284 = sshll.u32 %s5, 4
          %s285 = int_to_ptr.hbm [resolvable:$true] %s284
          %s286 = sshll.u32 [#allocation9], 4
          %s287 = int_to_ptr.vmem [resolvable:$true] %s286
          %292 = dma.hbm_to_vmem [thread:$0]  %s285, 2048, %s287, [#allocation10], 128, 128, 8
        $region32: #{tpu_custom_call.1} parent=11 // pred_fallthru
          _
        // Predicated region
        $region33: #{tpu_custom_call.1} parent=11 // pred_check
          %p293 = pneg %p178
        $region34: #{tpu_custom_call.1} parent=11 // pred_check_branch
          %295 = sbr.rel (%p293) target = $region36
        $region35: #{tpu_custom_call.1} parent=11 // pred_region
          %297 = vsyncadd [#allocation10], 0
          %s298 = sshll.u32 %s6, 4
          %s299 = int_to_ptr.hbm [resolvable:$true] %s298
          %s300 = sshll.u32 [#allocation11], 4
          %s301 = int_to_ptr.vmem [resolvable:$true] %s300
          %306 = dma.hbm_to_vmem [thread:$0]  %s299, 2048, %s301, [#allocation10], 128, 128, 8
        $region36: #{tpu_custom_call.1} parent=11 // pred_fallthru
          _
      $region12: #{tpu_custom_call.1} parent=5 // pred_fallthru
        _
      %p307 = scmp.lt.s32.totalorder %s26, 2
      // Predicated region
      $region37: #{tpu_custom_call.1} parent=5 // pred_check
        %p308 = pneg %p307
      $region38: #{tpu_custom_call.1} parent=5 // pred_check_branch
        %310 = sbr.rel (%p308) target = $region40
      $region39: #{tpu_custom_call.1} parent=5 // pred_region
        // Predicated region
        $region41: #{tpu_custom_call.1} parent=39 // pred_check
          %p311 = pneg %p46
        $region42: #{tpu_custom_call.1} parent=39 // pred_check_branch
          %313 = sbr.rel (%p311) target = $region44
        $region43: #{tpu_custom_call.1} parent=39 // pred_region
          %s314 = sand.u32 %s36, 1
          %s315 = scalar_lea.sflag [#allocation4], %s314
          %s316 = sand.u32 %s36, 1
          %s317 = smul.addr %s316, 128
          %s318 = scalar_lea.vmem [#allocation3], %s317
          %320 = vsyncadd %s315, 0
          %s321 = smul.addr %s26, 32
          %s322 = smul.addr %s321, 4
          %s323 = scalar_lea.hbm %s0, %s322
          %s324 = sshll.u32 %s323, 4
          %s325 = int_to_ptr.hbm [resolvable:$true] %s324
          %s326 = sshll.u32 %s318, 4
          %s327 = int_to_ptr.vmem [resolvable:$true] %s326
          %332 = dma.hbm_to_vmem [thread:$0]  %s325, 2048, %s327, %s315, 64, 64, 4
        $region44: #{tpu_custom_call.1} parent=39 // pred_fallthru
          _
      $region40: #{tpu_custom_call.1} parent=5 // pred_fallthru
        _
      %p333 = scmp.le.s32.totalorder 1, %s26
      %p334 = scmp.lt.s32.totalorder %s26, 3
      %p335 = pnand %p333, %p334
      %p336 = pneg %p335
      // Predicated region
      $region45: #{tpu_custom_call.1} parent=5 // pred_check
        _
      $region46: #{tpu_custom_call.1} parent=5 // pred_check_branch
        %338 = sbr.rel (%p335) target = $region48
      $region47: #{tpu_custom_call.1} parent=5 // pred_region
        %s339 = ssub.s32 %s26, 1
        %s340 = sand.u32 %s39, 1
        %s341 = scalar_lea.sflag [#allocation4], %s340
        %s342 = sand.u32 %s39, 1
        %s343 = smul.addr %s342, 128
        %s344 = scalar_lea.vmem [#allocation3], %s343
        // Predicated region
        $region49: #{tpu_custom_call.1} parent=47 // pred_check
          %p345 = pneg %p52
        $region50: #{tpu_custom_call.1} parent=47 // pred_check_branch
          %347 = sbr.rel (%p345) target = $region52
        $region51: #{tpu_custom_call.1} parent=47 // pred_region
          %349 = dma.done %s341, 2048
        $region52: #{tpu_custom_call.1} parent=47 // pred_fallthru
          _
        // Predicated region
        $region53: #{tpu_custom_call.1} parent=47 // pred_check
          %p350 = pneg %p73
        $region54: #{tpu_custom_call.1} parent=47 // pred_check_branch
          %352 = sbr.rel (%p350) target = $region56
        $region55: #{tpu_custom_call.1} parent=47 // pred_region
          %354 = dma.done [#allocation7], 1024
        $region56: #{tpu_custom_call.1} parent=47 // pred_fallthru
          _
        // Predicated region
        $region57: #{tpu_custom_call.1} parent=47 // pred_check
          %p355 = pneg %p115
        $region58: #{tpu_custom_call.1} parent=47 // pred_check_branch
          %357 = sbr.rel (%p355) target = $region60
        $region59: #{tpu_custom_call.1} parent=47 // pred_region
          %359 = dma.done [#allocation7], 256
        $region60: #{tpu_custom_call.1} parent=47 // pred_fallthru
          _
        // Predicated region
        $region61: #{tpu_custom_call.1} parent=47 // pred_check
          %p360 = pneg %p157
        $region62: #{tpu_custom_call.1} parent=47 // pred_check_branch
          %362 = sbr.rel (%p360) target = $region64
        $region63: #{tpu_custom_call.1} parent=47 // pred_region
          %364 = dma.done [#allocation10], 2048
        $region64: #{tpu_custom_call.1} parent=47 // pred_fallthru
          _
        // Predicated region
        $region65: #{tpu_custom_call.1} parent=47 // pred_check
          %p365 = pneg %p178
        $region66: #{tpu_custom_call.1} parent=47 // pred_check_branch
          %367 = sbr.rel (%p365) target = $region68
        $region67: #{tpu_custom_call.1} parent=47 // pred_region
          %369 = dma.done [#allocation10], 2048
        $region68: #{tpu_custom_call.1} parent=47 // pred_fallthru
          _
        %s370 = sand.u32 %s39, 1
        %s371 = scalar_lea.sflag [#allocation4], %s370
        %s372 = sand.u32 %s39, 1
        %s373 = smul.addr %s372, 128
        %s374 = scalar_lea.vmem [#allocation3], %s373
        %p375 = pneg %p52
        %p376 = pneg %p49
        %p377 = pneg %p73
        %p378 = pneg %p70
        %p379 = pneg %p94
        %p380 = pneg %p91
        %p381 = pneg %p115
        %p382 = pneg %p112
        %p383 = pneg %p136
        %p384 = pneg %p133
        %p385 = pneg %p157
        %p386 = pneg %p154
        %p387 = pneg %p178
        %p388 = pneg %p175
        %p389 = pneg %p204
        %p390 = pneg %p201
        %s391 = sand.u32 %s191, 1
        %s392 = scalar_lea.sflag [#allocation5], %s391
        %s393 = sand.u32 %s191, 1
        %s394 = smul.addr %s393, 128
        %s395 = scalar_lea.vmem [#allocation12], %s394
        %p396 = pneg %p230
        %p397 = pneg %p227
        %s398 = sand.u32 %s217, 1
        %s399 = scalar_lea.sflag [#allocation14], %s398
        %s400 = sand.u32 %s217, 1
        %s401 = scalar_lea.vmem [#allocation13], %s400
        %v402 = vld [vmem:[%s344] sm:$0xf]
        %v403 = vld [vmem:[%s344 + $0x4] sm:$0xf]
        %v404 = vld [vmem:[%s344 + $0x8] sm:$0xf]
        %v405 = vld [vmem:[%s344 + $0xc] sm:$0xf]
        %v406 = vld [vmem:[%s344 + $0x10] sm:$0xf]
        %v407 = vld [vmem:[%s344 + $0x14] sm:$0xf]
        %v408 = vld [vmem:[%s344 + $0x18] sm:$0xf]
        %v409 = vld [vmem:[%s344 + $0x1c] sm:$0xf]
        %v410 = vld [vmem:[%s344 + $0x20] sm:$0xf]
        %v411 = vld [vmem:[%s344 + $0x24] sm:$0xf]
        %v412 = vld [vmem:[%s344 + $0x28] sm:$0xf]
        %v413 = vld [vmem:[%s344 + $0x2c] sm:$0xf]
        %v414 = vld [vmem:[%s344 + $0x30] sm:$0xf]
        %v415 = vld [vmem:[%s344 + $0x34] sm:$0xf]
        %v416 = vld [vmem:[%s344 + $0x38] sm:$0xf]
        %v417 = vld [vmem:[%s344 + $0x3c] sm:$0xf]
        %v418 = vld [vmem:[%s344 + $0x40] sm:$0xf]
        %v419 = vld [vmem:[%s344 + $0x44] sm:$0xf]
        %v420 = vld [vmem:[%s344 + $0x48] sm:$0xf]
        %v421 = vld [vmem:[%s344 + $0x4c] sm:$0xf]
        %v422 = vld [vmem:[%s344 + $0x50] sm:$0xf]
        %v423 = vld [vmem:[%s344 + $0x54] sm:$0xf]
        %v424 = vld [vmem:[%s344 + $0x58] sm:$0xf]
        %v425 = vld [vmem:[%s344 + $0x5c] sm:$0xf]
        %v426 = vld [vmem:[%s344 + $0x60] sm:$0xf]
        %v427 = vld [vmem:[%s344 + $0x64] sm:$0xf]
        %v428 = vld [vmem:[%s344 + $0x68] sm:$0xf]
        %v429 = vld [vmem:[%s344 + $0x6c] sm:$0xf]
        %v430 = vld [vmem:[%s344 + $0x70] sm:$0xf]
        %v431 = vld [vmem:[%s344 + $0x74] sm:$0xf]
        %v432 = vld [vmem:[%s344 + $0x78] sm:$0xf]
        %v433 = vld [vmem:[%s344 + $0x7c] sm:$0xf]
        %v434 = vld [vmem:[#allocation6] sm:$0xf]
        %v435 = vld [vmem:[#allocation6 + $0x4] sm:$0xf]
        %v436 = vld [vmem:[#allocation6 + $0x8] sm:$0xf]
        %v437 = vld [vmem:[#allocation6 + $0xc] sm:$0xf]
        %v438 = vld [vmem:[#allocation6 + $0x10] sm:$0xf]
        %v439 = vld [vmem:[#allocation6 + $0x14] sm:$0xf]
        %v440 = vld [vmem:[#allocation6 + $0x18] sm:$0xf]
        %v441 = vld [vmem:[#allocation6 + $0x1c] sm:$0xf]
        %v442 = vld [vmem:[#allocation6 + $0x20] sm:$0xf]
        %v443 = vld [vmem:[#allocation6 + $0x24] sm:$0xf]
        %v444 = vld [vmem:[#allocation6 + $0x28] sm:$0xf]
        %v445 = vld [vmem:[#allocation6 + $0x2c] sm:$0xf]
        %v446 = vld [vmem:[#allocation6 + $0x30] sm:$0xf]
        %v447 = vld [vmem:[#allocation6 + $0x34] sm:$0xf]
        %v448 = vld [vmem:[#allocation6 + $0x38] sm:$0xf]
        %v449 = vld [vmem:[#allocation6 + $0x3c] sm:$0xf]
        %v450 = vld [vmem:[%s2] sm:$0x1]
        %v452 = vperm.slane %v450, 0
        %v486 = vunpack.c.l.b16 %v402
        %v487 = vunpack.c.l.b16 %v403
        %v488 = vunpack.c.l.b16 %v404
        %v489 = vunpack.c.l.b16 %v405
        %v490 = vunpack.c.l.b16 %v406
        %v491 = vunpack.c.l.b16 %v407
        %v492 = vunpack.c.l.b16 %v408
        %v493 = vunpack.c.l.b16 %v409
        %v494 = vunpack.c.l.b16 %v410
        %v495 = vunpack.c.l.b16 %v411
        %v496 = vunpack.c.l.b16 %v412
        %v497 = vunpack.c.l.b16 %v413
        %v498 = vunpack.c.l.b16 %v414
        %v499 = vunpack.c.l.b16 %v415
        %v500 = vunpack.c.l.b16 %v416
        %v501 = vunpack.c.l.b16 %v417
        %v502 = vunpack.c.l.b16 %v418
        %v503 = vunpack.c.l.b16 %v419
        %v504 = vunpack.c.l.b16 %v420
        %v505 = vunpack.c.l.b16 %v421
        %v506 = vunpack.c.l.b16 %v422
        %v507 = vunpack.c.l.b16 %v423
        %v508 = vunpack.c.l.b16 %v424
        %v509 = vunpack.c.l.b16 %v425
        %v510 = vunpack.c.l.b16 %v426
        %v511 = vunpack.c.l.b16 %v427
        %v512 = vunpack.c.l.b16 %v428
        %v513 = vunpack.c.l.b16 %v429
        %v514 = vunpack.c.l.b16 %v430
        %v515 = vunpack.c.l.b16 %v431
        %v516 = vunpack.c.l.b16 %v432
        %v517 = vunpack.c.l.b16 %v433
        %v518 = vpack.c.b16 %v487, %v486
        %v519 = vpack.c.b16 %v489, %v488
        %v520 = vpack.c.b16 %v491, %v490
        %v521 = vpack.c.b16 %v493, %v492
        %v522 = vpack.c.b16 %v495, %v494
        %v523 = vpack.c.b16 %v497, %v496
        %v524 = vpack.c.b16 %v499, %v498
        %v525 = vpack.c.b16 %v501, %v500
        %v526 = vpack.c.b16 %v503, %v502
        %v527 = vpack.c.b16 %v505, %v504
        %v528 = vpack.c.b16 %v507, %v506
        %v529 = vpack.c.b16 %v509, %v508
        %v530 = vpack.c.b16 %v511, %v510
        %v531 = vpack.c.b16 %v513, %v512
        %v532 = vpack.c.b16 %v515, %v514
        %v533 = vpack.c.b16 %v517, %v516
        %v566 = vunpack.c.l.b16 %v434
        %v567 = vunpack.c.l.b16 %v435
        %v568 = vunpack.c.l.b16 %v436
        %v569 = vunpack.c.l.b16 %v437
        %v570 = vunpack.c.l.b16 %v438
        %v571 = vunpack.c.l.b16 %v439
        %v572 = vunpack.c.l.b16 %v440
        %v573 = vunpack.c.l.b16 %v441
        %v574 = vunpack.c.l.b16 %v442
        %v575 = vunpack.c.l.b16 %v443
        %v576 = vunpack.c.l.b16 %v444
        %v577 = vunpack.c.l.b16 %v445
        %v578 = vunpack.c.l.b16 %v446
        %v579 = vunpack.c.l.b16 %v447
        %v580 = vunpack.c.l.b16 %v448
        %v581 = vunpack.c.l.b16 %v449
        %v582 = vpack.c.b16 %v567, %v566
        %v583 = vpack.c.b16 %v569, %v568
        %v584 = vpack.c.b16 %v571, %v570
        %v585 = vpack.c.b16 %v573, %v572
        %v586 = vpack.c.b16 %v575, %v574
        %v587 = vpack.c.b16 %v577, %v576
        %v588 = vpack.c.b16 %v579, %v578
        %v589 = vpack.c.b16 %v581, %v580
        %598 = vmatpush.bf16.msra.mxu0 %v589
        %599 = vmatpush.bf16.msra.mxu0 %v588
        %600 = vmatpush.bf16.msra.mxu0 %v587
        %601 = vmatpush.bf16.msra.mxu0 %v586
        %602 = vmatpush.bf16.msra.mxu0 %v585
        %603 = vmatpush.bf16.msra.mxu0 %v584
        %604 = vmatpush.bf16.msra.mxu0 %v583
        %605 = vmatpush.bf16.msra.mxu0 %v582
        %606 = vmatmul.bf16.gmra.mxu0 %v518
        %v607 = vpop.f32.mrf.mxu0
        %v608 = vadd.f32 %v452, %v607
        %v609 = vpop.f32.mrf.mxu0
        %v610 = vadd.f32 %v452, %v609
        %611 = vmatmul.bf16.gmra.mxu0 %v519
        %v612 = vpop.f32.mrf.mxu0
        %v613 = vadd.f32 %v452, %v612
        %v614 = vpop.f32.mrf.mxu0
        %v615 = vadd.f32 %v452, %v614
        %616 = vmatmul.bf16.gmra.mxu0 %v520
        %v617 = vpop.f32.mrf.mxu0
        %v618 = vadd.f32 %v452, %v617
        %v619 = vpop.f32.mrf.mxu0
        %v620 = vadd.f32 %v452, %v619
        %621 = vmatmul.bf16.gmra.mxu0 %v521
        %v622 = vpop.f32.mrf.mxu0
        %v623 = vadd.f32 %v452, %v622
        %v624 = vpop.f32.mrf.mxu0
        %v625 = vadd.f32 %v452, %v624
        %626 = vmatmul.bf16.gmra.mxu0 %v522
        %v627 = vpop.f32.mrf.mxu0
        %v628 = vadd.f32 %v452, %v627
        %v629 = vpop.f32.mrf.mxu0
        %v630 = vadd.f32 %v452, %v629
        %631 = vmatmul.bf16.gmra.mxu0 %v523
        %v632 = vpop.f32.mrf.mxu0
        %v633 = vadd.f32 %v452, %v632
        %v634 = vpop.f32.mrf.mxu0
        %v635 = vadd.f32 %v452, %v634
        %636 = vmatmul.bf16.gmra.mxu0 %v524
        %v637 = vpop.f32.mrf.mxu0
        %v638 = vadd.f32 %v452, %v637
        %v639 = vpop.f32.mrf.mxu0
        %v640 = vadd.f32 %v452, %v639
        %641 = vmatmul.bf16.gmra.mxu0 %v525
        %v642 = vpop.f32.mrf.mxu0
        %v643 = vadd.f32 %v452, %v642
        %v644 = vpop.f32.mrf.mxu0
        %v645 = vadd.f32 %v452, %v644
        %646 = vmatmul.bf16.gmra.mxu0 %v526
        %v647 = vpop.f32.mrf.mxu0
        %v648 = vadd.f32 %v452, %v647
        %v649 = vpop.f32.mrf.mxu0
        %v650 = vadd.f32 %v452, %v649
        %651 = vmatmul.bf16.gmra.mxu0 %v527
        %v652 = vpop.f32.mrf.mxu0
        %v653 = vadd.f32 %v452, %v652
        %v654 = vpop.f32.mrf.mxu0
        %v655 = vadd.f32 %v452, %v654
        %656 = vmatmul.bf16.gmra.mxu0 %v528
        %v657 = vpop.f32.mrf.mxu0
        %v658 = vadd.f32 %v452, %v657
        %v659 = vpop.f32.mrf.mxu0
        %v660 = vadd.f32 %v452, %v659
        %661 = vmatmul.bf16.gmra.mxu0 %v529
        %v662 = vpop.f32.mrf.mxu0
        %v663 = vadd.f32 %v452, %v662
        %v664 = vpop.f32.mrf.mxu0
        %v665 = vadd.f32 %v452, %v664
        %666 = vmatmul.bf16.gmra.mxu0 %v530
        %v667 = vpop.f32.mrf.mxu0
        %v668 = vadd.f32 %v452, %v667
        %v669 = vpop.f32.mrf.mxu0
        %v670 = vadd.f32 %v452, %v669
        %671 = vmatmul.bf16.gmra.mxu0 %v531
        %v672 = vpop.f32.mrf.mxu0
        %v673 = vadd.f32 %v452, %v672
        %v674 = vpop.f32.mrf.mxu0
        %v675 = vadd.f32 %v452, %v674
        %676 = vmatmul.bf16.gmra.mxu0 %v532
        %v677 = vpop.f32.mrf.mxu0
        %v678 = vadd.f32 %v452, %v677
        %v679 = vpop.f32.mrf.mxu0
        %v680 = vadd.f32 %v452, %v679
        %681 = vmatmul.bf16.gmra.mxu0 %v533
        %v682 = vpop.f32.mrf.mxu0
        %v683 = vadd.f32 %v452, %v682
        %v684 = vpop.f32.mrf.mxu0
        %v685 = vadd.f32 %v452, %v684
        %686 = vdwg.mxu0
        %v687 = vadd.f32 %v608, 3.0
        %v688 = vadd.f32 %v610, 3.0
        %v689 = vadd.f32 %v613, 3.0
        %v690 = vadd.f32 %v615, 3.0
        %v691 = vadd.f32 %v618, 3.0
        %v692 = vadd.f32 %v620, 3.0
        %v693 = vadd.f32 %v623, 3.0
        %v694 = vadd.f32 %v625, 3.0
        %v695 = vadd.f32 %v628, 3.0
        %v696 = vadd.f32 %v630, 3.0
        %v697 = vadd.f32 %v633, 3.0
        %v698 = vadd.f32 %v635, 3.0
        %v699 = vadd.f32 %v638, 3.0
        %v700 = vadd.f32 %v640, 3.0
        %v701 = vadd.f32 %v643, 3.0
        %v702 = vadd.f32 %v645, 3.0
        %v703 = vadd.f32 %v648, 3.0
        %v704 = vadd.f32 %v650, 3.0
        %v705 = vadd.f32 %v653, 3.0
        %v706 = vadd.f32 %v655, 3.0
        %v707 = vadd.f32 %v658, 3.0
        %v708 = vadd.f32 %v660, 3.0
        %v709 = vadd.f32 %v663, 3.0
        %v710 = vadd.f32 %v665, 3.0
        %v711 = vadd.f32 %v668, 3.0
        %v712 = vadd.f32 %v670, 3.0
        %v713 = vadd.f32 %v673, 3.0
        %v714 = vadd.f32 %v675, 3.0
        %v715 = vadd.f32 %v678, 3.0
        %v716 = vadd.f32 %v680, 3.0
        %v717 = vadd.f32 %v683, 3.0
        %v718 = vadd.f32 %v685, 3.0
        %v719 = vmax.f32 %v687, 0.0
        %v720 = vmax.f32 %v688, 0.0
        %v721 = vmax.f32 %v689, 0.0
        %v722 = vmax.f32 %v690, 0.0
        %v723 = vmax.f32 %v691, 0.0
        %v724 = vmax.f32 %v692, 0.0
        %v725 = vmax.f32 %v693, 0.0
        %v726 = vmax.f32 %v694, 0.0
        %v727 = vmax.f32 %v695, 0.0
        %v728 = vmax.f32 %v696, 0.0
        %v729 = vmax.f32 %v697, 0.0
        %v730 = vmax.f32 %v698, 0.0
        %v731 = vmax.f32 %v699, 0.0
        %v732 = vmax.f32 %v700, 0.0
        %v733 = vmax.f32 %v701, 0.0
        %v734 = vmax.f32 %v702, 0.0
        %v735 = vmax.f32 %v703, 0.0
        %v736 = vmax.f32 %v704, 0.0
        %v737 = vmax.f32 %v705, 0.0
        %v738 = vmax.f32 %v706, 0.0
        %v739 = vmax.f32 %v707, 0.0
        %v740 = vmax.f32 %v708, 0.0
        %v741 = vmax.f32 %v709, 0.0
        %v742 = vmax.f32 %v710, 0.0
        %v743 = vmax.f32 %v711, 0.0
        %v744 = vmax.f32 %v712, 0.0
        %v745 = vmax.f32 %v713, 0.0
        %v746 = vmax.f32 %v714, 0.0
        %v747 = vmax.f32 %v715, 0.0
        %v748 = vmax.f32 %v716, 0.0
        %v749 = vmax.f32 %v717, 0.0
        %v750 = vmax.f32 %v718, 0.0
        %v751 = vmin.f32 %v719, 6.0
        %v752 = vmin.f32 %v720, 6.0
        %v753 = vmin.f32 %v721, 6.0
        %v754 = vmin.f32 %v722, 6.0
        %v755 = vmin.f32 %v723, 6.0
        %v756 = vmin.f32 %v724, 6.0
        %v757 = vmin.f32 %v725, 6.0
        %v758 = vmin.f32 %v726, 6.0
        %v759 = vmin.f32 %v727, 6.0
        %v760 = vmin.f32 %v728, 6.0
        %v761 = vmin.f32 %v729, 6.0
        %v762 = vmin.f32 %v730, 6.0
        %v763 = vmin.f32 %v731, 6.0
        %v764 = vmin.f32 %v732, 6.0
        %v765 = vmin.f32 %v733, 6.0
        %v766 = vmin.f32 %v734, 6.0
        %v767 = vmin.f32 %v735, 6.0
        %v768 = vmin.f32 %v736, 6.0
        %v769 = vmin.f32 %v737, 6.0
        %v770 = vmin.f32 %v738, 6.0
        %v771 = vmin.f32 %v739, 6.0
        %v772 = vmin.f32 %v740, 6.0
        %v773 = vmin.f32 %v741, 6.0
        %v774 = vmin.f32 %v742, 6.0
        %v775 = vmin.f32 %v743, 6.0
        %v776 = vmin.f32 %v744, 6.0
        %v777 = vmin.f32 %v745, 6.0
        %v778 = vmin.f32 %v746, 6.0
        %v779 = vmin.f32 %v747, 6.0
        %v780 = vmin.f32 %v748, 6.0
        %v781 = vmin.f32 %v749, 6.0
        %v782 = vmin.f32 %v750, 6.0
        %v783 = vmul.f32 %v608, %v751
        %v784 = vmul.f32 %v610, %v752
        %v785 = vmul.f32 %v613, %v753
        %v786 = vmul.f32 %v615, %v754
        %v787 = vmul.f32 %v618, %v755
        %v788 = vmul.f32 %v620, %v756
        %v789 = vmul.f32 %v623, %v757
        %v790 = vmul.f32 %v625, %v758
        %v791 = vmul.f32 %v628, %v759
        %v792 = vmul.f32 %v630, %v760
        %v793 = vmul.f32 %v633, %v761
        %v794 = vmul.f32 %v635, %v762
        %v795 = vmul.f32 %v638, %v763
        %v796 = vmul.f32 %v640, %v764
        %v797 = vmul.f32 %v643, %v765
        %v798 = vmul.f32 %v645, %v766
        %v799 = vmul.f32 %v648, %v767
        %v800 = vmul.f32 %v650, %v768
        %v801 = vmul.f32 %v653, %v769
        %v802 = vmul.f32 %v655, %v770
        %v803 = vmul.f32 %v658, %v771
        %v804 = vmul.f32 %v660, %v772
        %v805 = vmul.f32 %v663, %v773
        %v806 = vmul.f32 %v665, %v774
        %v807 = vmul.f32 %v668, %v775
        %v808 = vmul.f32 %v670, %v776
        %v809 = vmul.f32 %v673, %v777
        %v810 = vmul.f32 %v675, %v778
        %v811 = vmul.f32 %v678, %v779
        %v812 = vmul.f32 %v680, %v780
        %v813 = vmul.f32 %v683, %v781
        %v814 = vmul.f32 %v685, %v782
        %v815 = vmul.f32 %v783, 0.16666667
        %v816 = vmul.f32 %v784, 0.16666667
        %v817 = vmul.f32 %v785, 0.16666667
        %v818 = vmul.f32 %v786, 0.16666667
        %v819 = vmul.f32 %v787, 0.16666667
        %v820 = vmul.f32 %v788, 0.16666667
        %v821 = vmul.f32 %v789, 0.16666667
        %v822 = vmul.f32 %v790, 0.16666667
        %v823 = vmul.f32 %v791, 0.16666667
        %v824 = vmul.f32 %v792, 0.16666667
        %v825 = vmul.f32 %v793, 0.16666667
        %v826 = vmul.f32 %v794, 0.16666667
        %v827 = vmul.f32 %v795, 0.16666667
        %v828 = vmul.f32 %v796, 0.16666667
        %v829 = vmul.f32 %v797, 0.16666667
        %v830 = vmul.f32 %v798, 0.16666667
        %v831 = vmul.f32 %v799, 0.16666667
        %v832 = vmul.f32 %v800, 0.16666667
        %v833 = vmul.f32 %v801, 0.16666667
        %v834 = vmul.f32 %v802, 0.16666667
        %v835 = vmul.f32 %v803, 0.16666667
        %v836 = vmul.f32 %v804, 0.16666667
        %v837 = vmul.f32 %v805, 0.16666667
        %v838 = vmul.f32 %v806, 0.16666667
        %v839 = vmul.f32 %v807, 0.16666667
        %v840 = vmul.f32 %v808, 0.16666667
        %v841 = vmul.f32 %v809, 0.16666667
        %v842 = vmul.f32 %v810, 0.16666667
        %v843 = vmul.f32 %v811, 0.16666667
        %v844 = vmul.f32 %v812, 0.16666667
        %v845 = vmul.f32 %v813, 0.16666667
        %v846 = vmul.f32 %v814, 0.16666667
        %847 = vst [vmem:[#allocation2] sm:$0xff] 0.0
        %848 = vst [vmem:[#allocation2 + $0x8] sm:$0xff] 0.0
        %849 = vst [vmem:[#allocation2 + $0x10] sm:$0x3] 0.0
        %850 = vst [vmem:[#allocation2 + $0x18] sm:$0xff] 0.0
        %851 = vst [vmem:[#allocation2 + $0x20] sm:$0xff] 0.0
        %852 = vst [vmem:[#allocation2 + $0x28] sm:$0x3] 0.0
        %853 = vst [vmem:[#allocation2 + $0x30] sm:$0xff] 0.0
        %854 = vst [vmem:[#allocation2 + $0x38] sm:$0xff] 0.0
        %855 = vst [vmem:[#allocation2 + $0x40] sm:$0x3] 0.0
        %856 = vst [vmem:[#allocation2 + $0x48] sm:$0xff] 0.0
        %857 = vst [vmem:[#allocation2 + $0x50] sm:$0xff] 0.0
        %858 = vst [vmem:[#allocation2 + $0x58] sm:$0x3] 0.0
        %859 = vst [vmem:[#allocation2 + $0x60] sm:$0xff] 0.0
        %860 = vst [vmem:[#allocation2 + $0x68] sm:$0xff] 0.0
        %861 = vst [vmem:[#allocation2 + $0x70] sm:$0x3] 0.0
        %862 = vst [vmem:[#allocation2 + $0x78] sm:$0xff] 0.0
        %863 = vst [vmem:[#allocation2 + $0x80] sm:$0xff] 0.0
        %864 = vst [vmem:[#allocation2 + $0x88] sm:$0x3] 0.0
        %865 = vst [vmem:[#allocation2 + $0x90] sm:$0xff] 0.0
        %866 = vst [vmem:[#allocation2 + $0x98] sm:$0xff] 0.0
        %867 = vst [vmem:[#allocation2 + $0xa0] sm:$0x3] 0.0
        %868 = vst [vmem:[#allocation2 + $0xa8] sm:$0xff] 0.0
        %869 = vst [vmem:[#allocation2 + $0xb0] sm:$0xff] 0.0
        %870 = vst [vmem:[#allocation2 + $0xb8] sm:$0x3] 0.0
        %871 = vst [vmem:[#allocation2 + $0xc0] sm:$0xff] 0.0
        %872 = vst [vmem:[#allocation2 + $0xc8] sm:$0xff] 0.0
        %873 = vst [vmem:[#allocation2 + $0xd0] sm:$0x3] 0.0
        %874 = vst [vmem:[#allocation2 + $0xd8] sm:$0xff] 0.0
        %875 = vst [vmem:[#allocation2 + $0xe0] sm:$0xff] 0.0
        %876 = vst [vmem:[#allocation2 + $0xe8] sm:$0x3] 0.0
        %877 = vst [vmem:[#allocation2 + $0xf0] sm:$0xff] 0.0
        %878 = vst [vmem:[#allocation2 + $0xf8] sm:$0xff] 0.0
        %879 = vst [vmem:[#allocation2 + $0x100] sm:$0x3] 0.0
        %880 = vst [vmem:[#allocation2 + $0x108] sm:$0xff] 0.0
        %881 = vst [vmem:[#allocation2 + $0x110] sm:$0xff] 0.0
        %882 = vst [vmem:[#allocation2 + $0x118] sm:$0x3] 0.0
        %883 = vst [vmem:[#allocation2 + $0x120] sm:$0xff] 0.0
        %884 = vst [vmem:[#allocation2 + $0x128] sm:$0xff] 0.0
        %885 = vst [vmem:[#allocation2 + $0x130] sm:$0x3] 0.0
        %886 = vst [vmem:[#allocation2 + $0x138] sm:$0xff] 0.0
        %887 = vst [vmem:[#allocation2 + $0x140] sm:$0xff] 0.0
        %888 = vst [vmem:[#allocation2 + $0x148] sm:$0x3] 0.0
        %889 = vst [vmem:[#allocation2 + $0x150] sm:$0xff] 0.0
        %890 = vst [vmem:[#allocation2 + $0x158] sm:$0xff] 0.0
        %891 = vst [vmem:[#allocation2 + $0x160] sm:$0x3] 0.0
        %892 = vst [vmem:[#allocation2 + $0x168] sm:$0xff] 0.0
        %893 = vst [vmem:[#allocation2 + $0x170] sm:$0xff] 0.0
        %894 = vst [vmem:[#allocation2 + $0x178] sm:$0x3] 0.0
        %895 = vst [vmem:[#allocation2 + $0x180] sm:$0xff] 0.0
        %896 = vst [vmem:[#allocation2 + $0x188] sm:$0xff] 0.0
        %897 = vst [vmem:[#allocation2 + $0x190] sm:$0x3] 0.0
        %898 = vst [vmem:[#allocation2 + $0x198] sm:$0xff] 0.0
        %899 = vst [vmem:[#allocation2 + $0x1a0] sm:$0xff] 0.0
        %900 = vst [vmem:[#allocation2 + $0x1a8] sm:$0x3] 0.0
        %s901 = scalar_lea.vmem [#allocation2], 24
        %902 = vst [vmem:[%s901 + $0x1] sm:$0xff] %v815
        %903 = vst [vmem:[%s901 + $0x9] sm:$0xff] %v816
        %904 = vst [vmem:[%s901 + $0x19] sm:$0xff] %v817
        %905 = vst [vmem:[%s901 + $0x21] sm:$0xff] %v818
        %906 = vst [vmem:[%s901 + $0x31] sm:$0xff] %v819
        %907 = vst [vmem:[%s901 + $0x39] sm:$0xff] %v820
        %908 = vst [vmem:[%s901 + $0x49] sm:$0xff] %v821
        %909 = vst [vmem:[%s901 + $0x51] sm:$0xff] %v822
        %910 = vst [vmem:[%s901 + $0x61] sm:$0xff] %v823
        %911 = vst [vmem:[%s901 + $0x69] sm:$0xff] %v824
        %912 = vst [vmem:[%s901 + $0x79] sm:$0xff] %v825
        %913 = vst [vmem:[%s901 + $0x81] sm:$0xff] %v826
        %914 = vst [vmem:[%s901 + $0x91] sm:$0xff] %v827
        %915 = vst [vmem:[%s901 + $0x99] sm:$0xff] %v828
        %916 = vst [vmem:[%s901 + $0xa9] sm:$0xff] %v829
        %917 = vst [vmem:[%s901 + $0xb1] sm:$0xff] %v830
        %918 = vst [vmem:[%s901 + $0xc1] sm:$0xff] %v831
        %919 = vst [vmem:[%s901 + $0xc9] sm:$0xff] %v832
        %920 = vst [vmem:[%s901 + $0xd9] sm:$0xff] %v833
        %921 = vst [vmem:[%s901 + $0xe1] sm:$0xff] %v834
        %922 = vst [vmem:[%s901 + $0xf1] sm:$0xff] %v835
        %923 = vst [vmem:[%s901 + $0xf9] sm:$0xff] %v836
        %924 = vst [vmem:[%s901 + $0x109] sm:$0xff] %v837
        %925 = vst [vmem:[%s901 + $0x111] sm:$0xff] %v838
        %926 = vst [vmem:[%s901 + $0x121] sm:$0xff] %v839
        %927 = vst [vmem:[%s901 + $0x129] sm:$0xff] %v840
        %928 = vst [vmem:[%s901 + $0x139] sm:$0xff] %v841
        %929 = vst [vmem:[%s901 + $0x141] sm:$0xff] %v842
        %930 = vst [vmem:[%s901 + $0x151] sm:$0xff] %v843
        %931 = vst [vmem:[%s901 + $0x159] sm:$0xff] %v844
        %932 = vst [vmem:[%s901 + $0x169] sm:$0xff] %v845
        %933 = vst [vmem:[%s901 + $0x171] sm:$0xff] %v846
        %v934 = vld [vmem:[#allocation8] sm:$0xff]
        %v935 = vld [vmem:[#allocation8 + $0x8] sm:$0x1]
        %v936 = vld [vmem:[%s4] sm:$0x1]
        %v937 = vld [vmem:[#allocation2] sm:$0xff]
        %v938 = vld [vmem:[#allocation2 + $0x8] sm:$0xff]
        %v939 = vld [vmem:[#allocation2 + $0x18] sm:$0xff]
        %v940 = vld [vmem:[#allocation2 + $0x20] sm:$0xff]
        %v941 = vld [vmem:[#allocation2 + $0x30] sm:$0xff]
        %v942 = vld [vmem:[#allocation2 + $0x38] sm:$0xff]
        %v943 = vld [vmem:[#allocation2 + $0x48] sm:$0xff]
        %v944 = vld [vmem:[#allocation2 + $0x50] sm:$0xff]
        %v945 = vld [vmem:[#allocation2 + $0x60] sm:$0xff]
        %v946 = vld [vmem:[#allocation2 + $0x68] sm:$0xff]
        %v947 = vld [vmem:[#allocation2 + $0x78] sm:$0xff]
        %v948 = vld [vmem:[#allocation2 + $0x80] sm:$0xff]
        %v949 = vld [vmem:[#allocation2 + $0x90] sm:$0xff]
        %v950 = vld [vmem:[#allocation2 + $0x98] sm:$0xff]
        %v951 = vld [vmem:[#allocation2 + $0xa8] sm:$0xff]
        %v952 = vld [vmem:[#allocation2 + $0xb0] sm:$0xff]
        %v953 = vld [vmem:[#allocation2 + $0xc0] sm:$0xff]
        %v954 = vld [vmem:[#allocation2 + $0xc8] sm:$0xff]
        %v955 = vld [vmem:[#allocation2 + $0xd8] sm:$0xff]
        %v956 = vld [vmem:[#allocation2 + $0xe0] sm:$0xff]
        %v957 = vld [vmem:[#allocation2 + $0xf0] sm:$0xff]
        %v958 = vld [vmem:[#allocation2 + $0xf8] sm:$0xff]
        %v959 = vld [vmem:[#allocation2 + $0x108] sm:$0xff]
        %v960 = vld [vmem:[#allocation2 + $0x110] sm:$0xff]
        %v961 = vld [vmem:[#allocation2 + $0x120] sm:$0xff]
        %v962 = vld [vmem:[#allocation2 + $0x128] sm:$0xff]
        %v963 = vld [vmem:[#allocation2 + $0x138] sm:$0xff]
        %v964 = vld [vmem:[#allocation2 + $0x140] sm:$0xff]
        %v965 = vld [vmem:[#allocation2 + $0x150] sm:$0xff]
        %v966 = vld [vmem:[#allocation2 + $0x158] sm:$0xff]
        %v967 = vld [vmem:[#allocation2 + $0x168] sm:$0xff]
        %v968 = vld [vmem:[#allocation2 + $0x170] sm:$0xff]
        %v969 = vperm.slane %v934, 0
        %v970 = vmul.f32 %v937, %v969
        %v971 = vmul.f32 %v938, %v969
        %v972 = vmul.f32 %v939, %v969
        %v973 = vmul.f32 %v940, %v969
        %v974 = vmul.f32 %v941, %v969
        %v975 = vmul.f32 %v942, %v969
        %v976 = vmul.f32 %v943, %v969
        %v977 = vmul.f32 %v944, %v969
        %v978 = vmul.f32 %v945, %v969
        %v979 = vmul.f32 %v946, %v969
        %v980 = vmul.f32 %v947, %v969
        %v981 = vmul.f32 %v948, %v969
        %v982 = vmul.f32 %v949, %v969
        %v983 = vmul.f32 %v950, %v969
        %v984 = vmul.f32 %v951, %v969
        %v985 = vmul.f32 %v952, %v969
        %v986 = vmul.f32 %v953, %v969
        %v987 = vmul.f32 %v954, %v969
        %v988 = vmul.f32 %v955, %v969
        %v989 = vmul.f32 %v956, %v969
        %v990 = vmul.f32 %v957, %v969
        %v991 = vmul.f32 %v958, %v969
        %v992 = vmul.f32 %v959, %v969
        %v993 = vmul.f32 %v960, %v969
        %v994 = vmul.f32 %v961, %v969
        %v995 = vmul.f32 %v962, %v969
        %v996 = vmul.f32 %v963, %v969
        %v997 = vmul.f32 %v964, %v969
        %v998 = vmul.f32 %v965, %v969
        %v999 = vmul.f32 %v966, %v969
        %v1000 = vmul.f32 %v967, %v969
        %v1001 = vmul.f32 %v968, %v969
        %v1002 = vadd.f32 %v970, 0.0
        %v1003 = vadd.f32 %v971, 0.0
        %v1004 = vadd.f32 %v972, 0.0
        %v1005 = vadd.f32 %v973, 0.0
        %v1006 = vadd.f32 %v974, 0.0
        %v1007 = vadd.f32 %v975, 0.0
        %v1008 = vadd.f32 %v976, 0.0
        %v1009 = vadd.f32 %v977, 0.0
        %v1010 = vadd.f32 %v978, 0.0
        %v1011 = vadd.f32 %v979, 0.0
        %v1012 = vadd.f32 %v980, 0.0
        %v1013 = vadd.f32 %v981, 0.0
        %v1014 = vadd.f32 %v982, 0.0
        %v1015 = vadd.f32 %v983, 0.0
        %v1016 = vadd.f32 %v984, 0.0
        %v1017 = vadd.f32 %v985, 0.0
        %v1018 = vadd.f32 %v986, 0.0
        %v1019 = vadd.f32 %v987, 0.0
        %v1020 = vadd.f32 %v988, 0.0
        %v1021 = vadd.f32 %v989, 0.0
        %v1022 = vadd.f32 %v990, 0.0
        %v1023 = vadd.f32 %v991, 0.0
        %v1024 = vadd.f32 %v992, 0.0
        %v1025 = vadd.f32 %v993, 0.0
        %v1026 = vadd.f32 %v994, 0.0
        %v1027 = vadd.f32 %v995, 0.0
        %v1028 = vadd.f32 %v996, 0.0
        %v1029 = vadd.f32 %v997, 0.0
        %v1030 = vadd.f32 %v998, 0.0
        %v1031 = vadd.f32 %v999, 0.0
        %v1032 = vadd.f32 %v1000, 0.0
        %v1033 = vadd.f32 %v1001, 0.0
        %v1034 = vld [vmem:[#allocation2 + $0x1] sm:$0xff]
        %v1035 = vld [vmem:[#allocation2 + $0x9] sm:$0xff]
        %v1036 = vld [vmem:[#allocation2 + $0x19] sm:$0xff]
        %v1037 = vld [vmem:[#allocation2 + $0x21] sm:$0xff]
        %v1038 = vld [vmem:[#allocation2 + $0x31] sm:$0xff]
        %v1039 = vld [vmem:[#allocation2 + $0x39] sm:$0xff]
        %v1040 = vld [vmem:[#allocation2 + $0x49] sm:$0xff]
        %v1041 = vld [vmem:[#allocation2 + $0x51] sm:$0xff]
        %v1042 = vld [vmem:[#allocation2 + $0x61] sm:$0xff]
        %v1043 = vld [vmem:[#allocation2 + $0x69] sm:$0xff]
        %v1044 = vld [vmem:[#allocation2 + $0x79] sm:$0xff]
        %v1045 = vld [vmem:[#allocation2 + $0x81] sm:$0xff]
        %v1046 = vld [vmem:[#allocation2 + $0x91] sm:$0xff]
        %v1047 = vld [vmem:[#allocation2 + $0x99] sm:$0xff]
        %v1048 = vld [vmem:[#allocation2 + $0xa9] sm:$0xff]
        %v1049 = vld [vmem:[#allocation2 + $0xb1] sm:$0xff]
        %v1050 = vld [vmem:[#allocation2 + $0xc1] sm:$0xff]
        %v1051 = vld [vmem:[#allocation2 + $0xc9] sm:$0xff]
        %v1052 = vld [vmem:[#allocation2 + $0xd9] sm:$0xff]
        %v1053 = vld [vmem:[#allocation2 + $0xe1] sm:$0xff]
        %v1054 = vld [vmem:[#allocation2 + $0xf1] sm:$0xff]
        %v1055 = vld [vmem:[#allocation2 + $0xf9] sm:$0xff]
        %v1056 = vld [vmem:[#allocation2 + $0x109] sm:$0xff]
        %v1057 = vld [vmem:[#allocation2 + $0x111] sm:$0xff]
        %v1058 = vld [vmem:[#allocation2 + $0x121] sm:$0xff]
        %v1059 = vld [vmem:[#allocation2 + $0x129] sm:$0xff]
        %v1060 = vld [vmem:[#allocation2 + $0x139] sm:$0xff]
        %v1061 = vld [vmem:[#allocation2 + $0x141] sm:$0xff]
        %v1062 = vld [vmem:[#allocation2 + $0x151] sm:$0xff]
        %v1063 = vld [vmem:[#allocation2 + $0x159] sm:$0xff]
        %v1064 = vld [vmem:[#allocation2 + $0x169] sm:$0xff]
        %v1065 = vld [vmem:[#allocation2 + $0x171] sm:$0xff]
        %v1066 = vperm.slane %v934, 1
        %v1067 = vmul.f32 %v1034, %v1066
        %v1068 = vmul.f32 %v1035, %v1066
        %v1069 = vmul.f32 %v1036, %v1066
        %v1070 = vmul.f32 %v1037, %v1066
        %v1071 = vmul.f32 %v1038, %v1066
        %v1072 = vmul.f32 %v1039, %v1066
        %v1073 = vmul.f32 %v1040, %v1066
        %v1074 = vmul.f32 %v1041, %v1066
        %v1075 = vmul.f32 %v1042, %v1066
        %v1076 = vmul.f32 %v1043, %v1066
        %v1077 = vmul.f32 %v1044, %v1066
        %v1078 = vmul.f32 %v1045, %v1066
        %v1079 = vmul.f32 %v1046, %v1066
        %v1080 = vmul.f32 %v1047, %v1066
        %v1081 = vmul.f32 %v1048, %v1066
        %v1082 = vmul.f32 %v1049, %v1066
        %v1083 = vmul.f32 %v1050, %v1066
        %v1084 = vmul.f32 %v1051, %v1066
        %v1085 = vmul.f32 %v1052, %v1066
        %v1086 = vmul.f32 %v1053, %v1066
        %v1087 = vmul.f32 %v1054, %v1066
        %v1088 = vmul.f32 %v1055, %v1066
        %v1089 = vmul.f32 %v1056, %v1066
        %v1090 = vmul.f32 %v1057, %v1066
        %v1091 = vmul.f32 %v1058, %v1066
        %v1092 = vmul.f32 %v1059, %v1066
        %v1093 = vmul.f32 %v1060, %v1066
        %v1094 = vmul.f32 %v1061, %v1066
        %v1095 = vmul.f32 %v1062, %v1066
        %v1096 = vmul.f32 %v1063, %v1066
        %v1097 = vmul.f32 %v1064, %v1066
        %v1098 = vmul.f32 %v1065, %v1066
        %v1099 = vadd.f32 %v1002, %v1067
        %v1100 = vadd.f32 %v1003, %v1068
        %v1101 = vadd.f32 %v1004, %v1069
        %v1102 = vadd.f32 %v1005, %v1070
        %v1103 = vadd.f32 %v1006, %v1071
        %v1104 = vadd.f32 %v1007, %v1072
        %v1105 = vadd.f32 %v1008, %v1073
        %v1106 = vadd.f32 %v1009, %v1074
        %v1107 = vadd.f32 %v1010, %v1075
        %v1108 = vadd.f32 %v1011, %v1076
        %v1109 = vadd.f32 %v1012, %v1077
        %v1110 = vadd.f32 %v1013, %v1078
        %v1111 = vadd.f32 %v1014, %v1079
        %v1112 = vadd.f32 %v1015, %v1080
        %v1113 = vadd.f32 %v1016, %v1081
        %v1114 = vadd.f32 %v1017, %v1082
        %v1115 = vadd.f32 %v1018, %v1083
        %v1116 = vadd.f32 %v1019, %v1084
        %v1117 = vadd.f32 %v1020, %v1085
        %v1118 = vadd.f32 %v1021, %v1086
        %v1119 = vadd.f32 %v1022, %v1087
        %v1120 = vadd.f32 %v1023, %v1088
        %v1121 = vadd.f32 %v1024, %v1089
        %v1122 = vadd.f32 %v1025, %v1090
        %v1123 = vadd.f32 %v1026, %v1091
        %v1124 = vadd.f32 %v1027, %v1092
        %v1125 = vadd.f32 %v1028, %v1093
        %v1126 = vadd.f32 %v1029, %v1094
        %v1127 = vadd.f32 %v1030, %v1095
        %v1128 = vadd.f32 %v1031, %v1096
        %v1129 = vadd.f32 %v1032, %v1097
        %v1130 = vadd.f32 %v1033, %v1098
        %v1131 = vld [vmem:[#allocation2 + $0x2] sm:$0xff]
        %v1132 = vld [vmem:[#allocation2 + $0xa] sm:$0xff]
        %v1133 = vld [vmem:[#allocation2 + $0x1a] sm:$0xff]
        %v1134 = vld [vmem:[#allocation2 + $0x22] sm:$0xff]
        %v1135 = vld [vmem:[#allocation2 + $0x32] sm:$0xff]
        %v1136 = vld [vmem:[#allocation2 + $0x3a] sm:$0xff]
        %v1137 = vld [vmem:[#allocation2 + $0x4a] sm:$0xff]
        %v1138 = vld [vmem:[#allocation2 + $0x52] sm:$0xff]
        %v1139 = vld [vmem:[#allocation2 + $0x62] sm:$0xff]
        %v1140 = vld [vmem:[#allocation2 + $0x6a] sm:$0xff]
        %v1141 = vld [vmem:[#allocation2 + $0x7a] sm:$0xff]
        %v1142 = vld [vmem:[#allocation2 + $0x82] sm:$0xff]
        %v1143 = vld [vmem:[#allocation2 + $0x92] sm:$0xff]
        %v1144 = vld [vmem:[#allocation2 + $0x9a] sm:$0xff]
        %v1145 = vld [vmem:[#allocation2 + $0xaa] sm:$0xff]
        %v1146 = vld [vmem:[#allocation2 + $0xb2] sm:$0xff]
        %v1147 = vld [vmem:[#allocation2 + $0xc2] sm:$0xff]
        %v1148 = vld [vmem:[#allocation2 + $0xca] sm:$0xff]
        %v1149 = vld [vmem:[#allocation2 + $0xda] sm:$0xff]
        %v1150 = vld [vmem:[#allocation2 + $0xe2] sm:$0xff]
        %v1151 = vld [vmem:[#allocation2 + $0xf2] sm:$0xff]
        %v1152 = vld [vmem:[#allocation2 + $0xfa] sm:$0xff]
        %v1153 = vld [vmem:[#allocation2 + $0x10a] sm:$0xff]
        %v1154 = vld [vmem:[#allocation2 + $0x112] sm:$0xff]
        %v1155 = vld [vmem:[#allocation2 + $0x122] sm:$0xff]
        %v1156 = vld [vmem:[#allocation2 + $0x12a] sm:$0xff]
        %v1157 = vld [vmem:[#allocation2 + $0x13a] sm:$0xff]
        %v1158 = vld [vmem:[#allocation2 + $0x142] sm:$0xff]
        %v1159 = vld [vmem:[#allocation2 + $0x152] sm:$0xff]
        %v1160 = vld [vmem:[#allocation2 + $0x15a] sm:$0xff]
        %v1161 = vld [vmem:[#allocation2 + $0x16a] sm:$0xff]
        %v1162 = vld [vmem:[#allocation2 + $0x172] sm:$0xff]
        %v1163 = vperm.slane %v934, 2
        %v1164 = vmul.f32 %v1131, %v1163
        %v1165 = vmul.f32 %v1132, %v1163
        %v1166 = vmul.f32 %v1133, %v1163
        %v1167 = vmul.f32 %v1134, %v1163
        %v1168 = vmul.f32 %v1135, %v1163
        %v1169 = vmul.f32 %v1136, %v1163
        %v1170 = vmul.f32 %v1137, %v1163
        %v1171 = vmul.f32 %v1138, %v1163
        %v1172 = vmul.f32 %v1139, %v1163
        %v1173 = vmul.f32 %v1140, %v1163
        %v1174 = vmul.f32 %v1141, %v1163
        %v1175 = vmul.f32 %v1142, %v1163
        %v1176 = vmul.f32 %v1143, %v1163
        %v1177 = vmul.f32 %v1144, %v1163
        %v1178 = vmul.f32 %v1145, %v1163
        %v1179 = vmul.f32 %v1146, %v1163
        %v1180 = vmul.f32 %v1147, %v1163
        %v1181 = vmul.f32 %v1148, %v1163
        %v1182 = vmul.f32 %v1149, %v1163
        %v1183 = vmul.f32 %v1150, %v1163
        %v1184 = vmul.f32 %v1151, %v1163
        %v1185 = vmul.f32 %v1152, %v1163
        %v1186 = vmul.f32 %v1153, %v1163
        %v1187 = vmul.f32 %v1154, %v1163
        %v1188 = vmul.f32 %v1155, %v1163
        %v1189 = vmul.f32 %v1156, %v1163
        %v1190 = vmul.f32 %v1157, %v1163
        %v1191 = vmul.f32 %v1158, %v1163
        %v1192 = vmul.f32 %v1159, %v1163
        %v1193 = vmul.f32 %v1160, %v1163
        %v1194 = vmul.f32 %v1161, %v1163
        %v1195 = vmul.f32 %v1162, %v1163
        %v1196 = vadd.f32 %v1099, %v1164
        %v1197 = vadd.f32 %v1100, %v1165
        %v1198 = vadd.f32 %v1101, %v1166
        %v1199 = vadd.f32 %v1102, %v1167
        %v1200 = vadd.f32 %v1103, %v1168
        %v1201 = vadd.f32 %v1104, %v1169
        %v1202 = vadd.f32 %v1105, %v1170
        %v1203 = vadd.f32 %v1106, %v1171
        %v1204 = vadd.f32 %v1107, %v1172
        %v1205 = vadd.f32 %v1108, %v1173
        %v1206 = vadd.f32 %v1109, %v1174
        %v1207 = vadd.f32 %v1110, %v1175
        %v1208 = vadd.f32 %v1111, %v1176
        %v1209 = vadd.f32 %v1112, %v1177
        %v1210 = vadd.f32 %v1113, %v1178
        %v1211 = vadd.f32 %v1114, %v1179
        %v1212 = vadd.f32 %v1115, %v1180
        %v1213 = vadd.f32 %v1116, %v1181
        %v1214 = vadd.f32 %v1117, %v1182
        %v1215 = vadd.f32 %v1118, %v1183
        %v1216 = vadd.f32 %v1119, %v1184
        %v1217 = vadd.f32 %v1120, %v1185
        %v1218 = vadd.f32 %v1121, %v1186
        %v1219 = vadd.f32 %v1122, %v1187
        %v1220 = vadd.f32 %v1123, %v1188
        %v1221 = vadd.f32 %v1124, %v1189
        %v1222 = vadd.f32 %v1125, %v1190
        %v1223 = vadd.f32 %v1126, %v1191
        %v1224 = vadd.f32 %v1127, %v1192
        %v1225 = vadd.f32 %v1128, %v1193
        %v1226 = vadd.f32 %v1129, %v1194
        %v1227 = vadd.f32 %v1130, %v1195
        %v1228 = vld [vmem:[%s901] sm:$0xff]
        %v1229 = vld [vmem:[%s901 + $0x8] sm:$0xff]
        %v1230 = vld [vmem:[%s901 + $0x18] sm:$0xff]
        %v1231 = vld [vmem:[%s901 + $0x20] sm:$0xff]
        %v1232 = vld [vmem:[%s901 + $0x30] sm:$0xff]
        %v1233 = vld [vmem:[%s901 + $0x38] sm:$0xff]
        %v1234 = vld [vmem:[%s901 + $0x48] sm:$0xff]
        %v1235 = vld [vmem:[%s901 + $0x50] sm:$0xff]
        %v1236 = vld [vmem:[%s901 + $0x60] sm:$0xff]
        %v1237 = vld [vmem:[%s901 + $0x68] sm:$0xff]
        %v1238 = vld [vmem:[%s901 + $0x78] sm:$0xff]
        %v1239 = vld [vmem:[%s901 + $0x80] sm:$0xff]
        %v1240 = vld [vmem:[%s901 + $0x90] sm:$0xff]
        %v1241 = vld [vmem:[%s901 + $0x98] sm:$0xff]
        %v1242 = vld [vmem:[%s901 + $0xa8] sm:$0xff]
        %v1243 = vld [vmem:[%s901 + $0xb0] sm:$0xff]
        %v1244 = vld [vmem:[%s901 + $0xc0] sm:$0xff]
        %v1245 = vld [vmem:[%s901 + $0xc8] sm:$0xff]
        %v1246 = vld [vmem:[%s901 + $0xd8] sm:$0xff]
        %v1247 = vld [vmem:[%s901 + $0xe0] sm:$0xff]
        %v1248 = vld [vmem:[%s901 + $0xf0] sm:$0xff]
        %v1249 = vld [vmem:[%s901 + $0xf8] sm:$0xff]
        %v1250 = vld [vmem:[%s901 + $0x108] sm:$0xff]
        %v1251 = vld [vmem:[%s901 + $0x110] sm:$0xff]
        %v1252 = vld [vmem:[%s901 + $0x120] sm:$0xff]
        %v1253 = vld [vmem:[%s901 + $0x128] sm:$0xff]
        %v1254 = vld [vmem:[%s901 + $0x138] sm:$0xff]
        %v1255 = vld [vmem:[%s901 + $0x140] sm:$0xff]
        %v1256 = vld [vmem:[%s901 + $0x150] sm:$0xff]
        %v1257 = vld [vmem:[%s901 + $0x158] sm:$0xff]
        %v1258 = vld [vmem:[%s901 + $0x168] sm:$0xff]
        %v1259 = vld [vmem:[%s901 + $0x170] sm:$0xff]
        %v1260 = vperm.slane %v934, 3
        %v1261 = vmul.f32 %v1228, %v1260
        %v1262 = vmul.f32 %v1229, %v1260
        %v1263 = vmul.f32 %v1230, %v1260
        %v1264 = vmul.f32 %v1231, %v1260
        %v1265 = vmul.f32 %v1232, %v1260
        %v1266 = vmul.f32 %v1233, %v1260
        %v1267 = vmul.f32 %v1234, %v1260
        %v1268 = vmul.f32 %v1235, %v1260
        %v1269 = vmul.f32 %v1236, %v1260
        %v1270 = vmul.f32 %v1237, %v1260
        %v1271 = vmul.f32 %v1238, %v1260
        %v1272 = vmul.f32 %v1239, %v1260
        %v1273 = vmul.f32 %v1240, %v1260
        %v1274 = vmul.f32 %v1241, %v1260
        %v1275 = vmul.f32 %v1242, %v1260
        %v1276 = vmul.f32 %v1243, %v1260
        %v1277 = vmul.f32 %v1244, %v1260
        %v1278 = vmul.f32 %v1245, %v1260
        %v1279 = vmul.f32 %v1246, %v1260
        %v1280 = vmul.f32 %v1247, %v1260
        %v1281 = vmul.f32 %v1248, %v1260
        %v1282 = vmul.f32 %v1249, %v1260
        %v1283 = vmul.f32 %v1250, %v1260
        %v1284 = vmul.f32 %v1251, %v1260
        %v1285 = vmul.f32 %v1252, %v1260
        %v1286 = vmul.f32 %v1253, %v1260
        %v1287 = vmul.f32 %v1254, %v1260
        %v1288 = vmul.f32 %v1255, %v1260
        %v1289 = vmul.f32 %v1256, %v1260
        %v1290 = vmul.f32 %v1257, %v1260
        %v1291 = vmul.f32 %v1258, %v1260
        %v1292 = vmul.f32 %v1259, %v1260
        %v1293 = vadd.f32 %v1196, %v1261
        %v1294 = vadd.f32 %v1197, %v1262
        %v1295 = vadd.f32 %v1198, %v1263
        %v1296 = vadd.f32 %v1199, %v1264
        %v1297 = vadd.f32 %v1200, %v1265
        %v1298 = vadd.f32 %v1201, %v1266
        %v1299 = vadd.f32 %v1202, %v1267
        %v1300 = vadd.f32 %v1203, %v1268
        %v1301 = vadd.f32 %v1204, %v1269
        %v1302 = vadd.f32 %v1205, %v1270
        %v1303 = vadd.f32 %v1206, %v1271
        %v1304 = vadd.f32 %v1207, %v1272
        %v1305 = vadd.f32 %v1208, %v1273
        %v1306 = vadd.f32 %v1209, %v1274
        %v1307 = vadd.f32 %v1210, %v1275
        %v1308 = vadd.f32 %v1211, %v1276
        %v1309 = vadd.f32 %v1212, %v1277
        %v1310 = vadd.f32 %v1213, %v1278
        %v1311 = vadd.f32 %v1214, %v1279
        %v1312 = vadd.f32 %v1215, %v1280
        %v1313 = vadd.f32 %v1216, %v1281
        %v1314 = vadd.f32 %v1217, %v1282
        %v1315 = vadd.f32 %v1218, %v1283
        %v1316 = vadd.f32 %v1219, %v1284
        %v1317 = vadd.f32 %v1220, %v1285
        %v1318 = vadd.f32 %v1221, %v1286
        %v1319 = vadd.f32 %v1222, %v1287
        %v1320 = vadd.f32 %v1223, %v1288
        %v1321 = vadd.f32 %v1224, %v1289
        %v1322 = vadd.f32 %v1225, %v1290
        %v1323 = vadd.f32 %v1226, %v1291
        %v1324 = vadd.f32 %v1227, %v1292
        %v1325 = vld [vmem:[%s901 + $0x1] sm:$0xff]
        %v1326 = vld [vmem:[%s901 + $0x9] sm:$0xff]
        %v1327 = vld [vmem:[%s901 + $0x19] sm:$0xff]
        %v1328 = vld [vmem:[%s901 + $0x21] sm:$0xff]
        %v1329 = vld [vmem:[%s901 + $0x31] sm:$0xff]
        %v1330 = vld [vmem:[%s901 + $0x39] sm:$0xff]
        %v1331 = vld [vmem:[%s901 + $0x49] sm:$0xff]
        %v1332 = vld [vmem:[%s901 + $0x51] sm:$0xff]
        %v1333 = vld [vmem:[%s901 + $0x61] sm:$0xff]
        %v1334 = vld [vmem:[%s901 + $0x69] sm:$0xff]
        %v1335 = vld [vmem:[%s901 + $0x79] sm:$0xff]
        %v1336 = vld [vmem:[%s901 + $0x81] sm:$0xff]
        %v1337 = vld [vmem:[%s901 + $0x91] sm:$0xff]
        %v1338 = vld [vmem:[%s901 + $0x99] sm:$0xff]
        %v1339 = vld [vmem:[%s901 + $0xa9] sm:$0xff]
        %v1340 = vld [vmem:[%s901 + $0xb1] sm:$0xff]
        %v1341 = vld [vmem:[%s901 + $0xc1] sm:$0xff]
        %v1342 = vld [vmem:[%s901 + $0xc9] sm:$0xff]
        %v1343 = vld [vmem:[%s901 + $0xd9] sm:$0xff]
        %v1344 = vld [vmem:[%s901 + $0xe1] sm:$0xff]
        %v1345 = vld [vmem:[%s901 + $0xf1] sm:$0xff]
        %v1346 = vld [vmem:[%s901 + $0xf9] sm:$0xff]
        %v1347 = vld [vmem:[%s901 + $0x109] sm:$0xff]
        %v1348 = vld [vmem:[%s901 + $0x111] sm:$0xff]
        %v1349 = vld [vmem:[%s901 + $0x121] sm:$0xff]
        %v1350 = vld [vmem:[%s901 + $0x129] sm:$0xff]
        %v1351 = vld [vmem:[%s901 + $0x139] sm:$0xff]
        %v1352 = vld [vmem:[%s901 + $0x141] sm:$0xff]
        %v1353 = vld [vmem:[%s901 + $0x151] sm:$0xff]
        %v1354 = vld [vmem:[%s901 + $0x159] sm:$0xff]
        %v1355 = vld [vmem:[%s901 + $0x169] sm:$0xff]
        %v1356 = vld [vmem:[%s901 + $0x171] sm:$0xff]
        %v1357 = vperm.slane %v934, 4
        %v1358 = vmul.f32 %v1325, %v1357
        %v1359 = vmul.f32 %v1326, %v1357
        %v1360 = vmul.f32 %v1327, %v1357
        %v1361 = vmul.f32 %v1328, %v1357
        %v1362 = vmul.f32 %v1329, %v1357
        %v1363 = vmul.f32 %v1330, %v1357
        %v1364 = vmul.f32 %v1331, %v1357
        %v1365 = vmul.f32 %v1332, %v1357
        %v1366 = vmul.f32 %v1333, %v1357
        %v1367 = vmul.f32 %v1334, %v1357
        %v1368 = vmul.f32 %v1335, %v1357
        %v1369 = vmul.f32 %v1336, %v1357
        %v1370 = vmul.f32 %v1337, %v1357
        %v1371 = vmul.f32 %v1338, %v1357
        %v1372 = vmul.f32 %v1339, %v1357
        %v1373 = vmul.f32 %v1340, %v1357
        %v1374 = vmul.f32 %v1341, %v1357
        %v1375 = vmul.f32 %v1342, %v1357
        %v1376 = vmul.f32 %v1343, %v1357
        %v1377 = vmul.f32 %v1344, %v1357
        %v1378 = vmul.f32 %v1345, %v1357
        %v1379 = vmul.f32 %v1346, %v1357
        %v1380 = vmul.f32 %v1347, %v1357
        %v1381 = vmul.f32 %v1348, %v1357
        %v1382 = vmul.f32 %v1349, %v1357
        %v1383 = vmul.f32 %v1350, %v1357
        %v1384 = vmul.f32 %v1351, %v1357
        %v1385 = vmul.f32 %v1352, %v1357
        %v1386 = vmul.f32 %v1353, %v1357
        %v1387 = vmul.f32 %v1354, %v1357
        %v1388 = vmul.f32 %v1355, %v1357
        %v1389 = vmul.f32 %v1356, %v1357
        %v1390 = vadd.f32 %v1293, %v1358
        %v1391 = vadd.f32 %v1294, %v1359
        %v1392 = vadd.f32 %v1295, %v1360
        %v1393 = vadd.f32 %v1296, %v1361
        %v1394 = vadd.f32 %v1297, %v1362
        %v1395 = vadd.f32 %v1298, %v1363
        %v1396 = vadd.f32 %v1299, %v1364
        %v1397 = vadd.f32 %v1300, %v1365
        %v1398 = vadd.f32 %v1301, %v1366
        %v1399 = vadd.f32 %v1302, %v1367
        %v1400 = vadd.f32 %v1303, %v1368
        %v1401 = vadd.f32 %v1304, %v1369
        %v1402 = vadd.f32 %v1305, %v1370
        %v1403 = vadd.f32 %v1306, %v1371
        %v1404 = vadd.f32 %v1307, %v1372
        %v1405 = vadd.f32 %v1308, %v1373
        %v1406 = vadd.f32 %v1309, %v1374
        %v1407 = vadd.f32 %v1310, %v1375
        %v1408 = vadd.f32 %v1311, %v1376
        %v1409 = vadd.f32 %v1312, %v1377
        %v1410 = vadd.f32 %v1313, %v1378
        %v1411 = vadd.f32 %v1314, %v1379
        %v1412 = vadd.f32 %v1315, %v1380
        %v1413 = vadd.f32 %v1316, %v1381
        %v1414 = vadd.f32 %v1317, %v1382
        %v1415 = vadd.f32 %v1318, %v1383
        %v1416 = vadd.f32 %v1319, %v1384
        %v1417 = vadd.f32 %v1320, %v1385
        %v1418 = vadd.f32 %v1321, %v1386
        %v1419 = vadd.f32 %v1322, %v1387
        %v1420 = vadd.f32 %v1323, %v1388
        %v1421 = vadd.f32 %v1324, %v1389
        %v1422 = vld [vmem:[%s901 + $0x2] sm:$0xff]
        %v1423 = vld [vmem:[%s901 + $0xa] sm:$0xff]
        %v1424 = vld [vmem:[%s901 + $0x1a] sm:$0xff]
        %v1425 = vld [vmem:[%s901 + $0x22] sm:$0xff]
        %v1426 = vld [vmem:[%s901 + $0x32] sm:$0xff]
        %v1427 = vld [vmem:[%s901 + $0x3a] sm:$0xff]
        %v1428 = vld [vmem:[%s901 + $0x4a] sm:$0xff]
        %v1429 = vld [vmem:[%s901 + $0x52] sm:$0xff]
        %v1430 = vld [vmem:[%s901 + $0x62] sm:$0xff]
        %v1431 = vld [vmem:[%s901 + $0x6a] sm:$0xff]
        %v1432 = vld [vmem:[%s901 + $0x7a] sm:$0xff]
        %v1433 = vld [vmem:[%s901 + $0x82] sm:$0xff]
        %v1434 = vld [vmem:[%s901 + $0x92] sm:$0xff]
        %v1435 = vld [vmem:[%s901 + $0x9a] sm:$0xff]
        %v1436 = vld [vmem:[%s901 + $0xaa] sm:$0xff]
        %v1437 = vld [vmem:[%s901 + $0xb2] sm:$0xff]
        %v1438 = vld [vmem:[%s901 + $0xc2] sm:$0xff]
        %v1439 = vld [vmem:[%s901 + $0xca] sm:$0xff]
        %v1440 = vld [vmem:[%s901 + $0xda] sm:$0xff]
        %v1441 = vld [vmem:[%s901 + $0xe2] sm:$0xff]
        %v1442 = vld [vmem:[%s901 + $0xf2] sm:$0xff]
        %v1443 = vld [vmem:[%s901 + $0xfa] sm:$0xff]
        %v1444 = vld [vmem:[%s901 + $0x10a] sm:$0xff]
        %v1445 = vld [vmem:[%s901 + $0x112] sm:$0xff]
        %v1446 = vld [vmem:[%s901 + $0x122] sm:$0xff]
        %v1447 = vld [vmem:[%s901 + $0x12a] sm:$0xff]
        %v1448 = vld [vmem:[%s901 + $0x13a] sm:$0xff]
        %v1449 = vld [vmem:[%s901 + $0x142] sm:$0xff]
        %v1450 = vld [vmem:[%s901 + $0x152] sm:$0xff]
        %v1451 = vld [vmem:[%s901 + $0x15a] sm:$0xff]
        %v1452 = vld [vmem:[%s901 + $0x16a] sm:$0xff]
        %v1453 = vld [vmem:[%s901 + $0x172] sm:$0xff]
        %v1454 = vperm.slane %v934, 5
        %v1455 = vmul.f32 %v1422, %v1454
        %v1456 = vmul.f32 %v1423, %v1454
        %v1457 = vmul.f32 %v1424, %v1454
        %v1458 = vmul.f32 %v1425, %v1454
        %v1459 = vmul.f32 %v1426, %v1454
        %v1460 = vmul.f32 %v1427, %v1454
        %v1461 = vmul.f32 %v1428, %v1454
        %v1462 = vmul.f32 %v1429, %v1454
        %v1463 = vmul.f32 %v1430, %v1454
        %v1464 = vmul.f32 %v1431, %v1454
        %v1465 = vmul.f32 %v1432, %v1454
        %v1466 = vmul.f32 %v1433, %v1454
        %v1467 = vmul.f32 %v1434, %v1454
        %v1468 = vmul.f32 %v1435, %v1454
        %v1469 = vmul.f32 %v1436, %v1454
        %v1470 = vmul.f32 %v1437, %v1454
        %v1471 = vmul.f32 %v1438, %v1454
        %v1472 = vmul.f32 %v1439, %v1454
        %v1473 = vmul.f32 %v1440, %v1454
        %v1474 = vmul.f32 %v1441, %v1454
        %v1475 = vmul.f32 %v1442, %v1454
        %v1476 = vmul.f32 %v1443, %v1454
        %v1477 = vmul.f32 %v1444, %v1454
        %v1478 = vmul.f32 %v1445, %v1454
        %v1479 = vmul.f32 %v1446, %v1454
        %v1480 = vmul.f32 %v1447, %v1454
        %v1481 = vmul.f32 %v1448, %v1454
        %v1482 = vmul.f32 %v1449, %v1454
        %v1483 = vmul.f32 %v1450, %v1454
        %v1484 = vmul.f32 %v1451, %v1454
        %v1485 = vmul.f32 %v1452, %v1454
        %v1486 = vmul.f32 %v1453, %v1454
        %v1487 = vadd.f32 %v1390, %v1455
        %v1488 = vadd.f32 %v1391, %v1456
        %v1489 = vadd.f32 %v1392, %v1457
        %v1490 = vadd.f32 %v1393, %v1458
        %v1491 = vadd.f32 %v1394, %v1459
        %v1492 = vadd.f32 %v1395, %v1460
        %v1493 = vadd.f32 %v1396, %v1461
        %v1494 = vadd.f32 %v1397, %v1462
        %v1495 = vadd.f32 %v1398, %v1463
        %v1496 = vadd.f32 %v1399, %v1464
        %v1497 = vadd.f32 %v1400, %v1465
        %v1498 = vadd.f32 %v1401, %v1466
        %v1499 = vadd.f32 %v1402, %v1467
        %v1500 = vadd.f32 %v1403, %v1468
        %v1501 = vadd.f32 %v1404, %v1469
        %v1502 = vadd.f32 %v1405, %v1470
        %v1503 = vadd.f32 %v1406, %v1471
        %v1504 = vadd.f32 %v1407, %v1472
        %v1505 = vadd.f32 %v1408, %v1473
        %v1506 = vadd.f32 %v1409, %v1474
        %v1507 = vadd.f32 %v1410, %v1475
        %v1508 = vadd.f32 %v1411, %v1476
        %v1509 = vadd.f32 %v1412, %v1477
        %v1510 = vadd.f32 %v1413, %v1478
        %v1511 = vadd.f32 %v1414, %v1479
        %v1512 = vadd.f32 %v1415, %v1480
        %v1513 = vadd.f32 %v1416, %v1481
        %v1514 = vadd.f32 %v1417, %v1482
        %v1515 = vadd.f32 %v1418, %v1483
        %v1516 = vadd.f32 %v1419, %v1484
        %v1517 = vadd.f32 %v1420, %v1485
        %v1518 = vadd.f32 %v1421, %v1486
        %s1519 = scalar_lea.vmem [#allocation2], 48
        %v1520 = vld [vmem:[%s1519] sm:$0xff]
        %v1521 = vld [vmem:[%s1519 + $0x8] sm:$0xff]
        %v1522 = vld [vmem:[%s1519 + $0x18] sm:$0xff]
        %v1523 = vld [vmem:[%s1519 + $0x20] sm:$0xff]
        %v1524 = vld [vmem:[%s1519 + $0x30] sm:$0xff]
        %v1525 = vld [vmem:[%s1519 + $0x38] sm:$0xff]
        %v1526 = vld [vmem:[%s1519 + $0x48] sm:$0xff]
        %v1527 = vld [vmem:[%s1519 + $0x50] sm:$0xff]
        %v1528 = vld [vmem:[%s1519 + $0x60] sm:$0xff]
        %v1529 = vld [vmem:[%s1519 + $0x68] sm:$0xff]
        %v1530 = vld [vmem:[%s1519 + $0x78] sm:$0xff]
        %v1531 = vld [vmem:[%s1519 + $0x80] sm:$0xff]
        %v1532 = vld [vmem:[%s1519 + $0x90] sm:$0xff]
        %v1533 = vld [vmem:[%s1519 + $0x98] sm:$0xff]
        %v1534 = vld [vmem:[%s1519 + $0xa8] sm:$0xff]
        %v1535 = vld [vmem:[%s1519 + $0xb0] sm:$0xff]
        %v1536 = vld [vmem:[%s1519 + $0xc0] sm:$0xff]
        %v1537 = vld [vmem:[%s1519 + $0xc8] sm:$0xff]
        %v1538 = vld [vmem:[%s1519 + $0xd8] sm:$0xff]
        %v1539 = vld [vmem:[%s1519 + $0xe0] sm:$0xff]
        %v1540 = vld [vmem:[%s1519 + $0xf0] sm:$0xff]
        %v1541 = vld [vmem:[%s1519 + $0xf8] sm:$0xff]
        %v1542 = vld [vmem:[%s1519 + $0x108] sm:$0xff]
        %v1543 = vld [vmem:[%s1519 + $0x110] sm:$0xff]
        %v1544 = vld [vmem:[%s1519 + $0x120] sm:$0xff]
        %v1545 = vld [vmem:[%s1519 + $0x128] sm:$0xff]
        %v1546 = vld [vmem:[%s1519 + $0x138] sm:$0xff]
        %v1547 = vld [vmem:[%s1519 + $0x140] sm:$0xff]
        %v1548 = vld [vmem:[%s1519 + $0x150] sm:$0xff]
        %v1549 = vld [vmem:[%s1519 + $0x158] sm:$0xff]
        %v1550 = vld [vmem:[%s1519 + $0x168] sm:$0xff]
        %v1551 = vld [vmem:[%s1519 + $0x170] sm:$0xff]
        %v1552 = vperm.slane %v934, 6
        %v1553 = vmul.f32 %v1520, %v1552
        %v1554 = vmul.f32 %v1521, %v1552
        %v1555 = vmul.f32 %v1522, %v1552
        %v1556 = vmul.f32 %v1523, %v1552
        %v1557 = vmul.f32 %v1524, %v1552
        %v1558 = vmul.f32 %v1525, %v1552
        %v1559 = vmul.f32 %v1526, %v1552
        %v1560 = vmul.f32 %v1527, %v1552
        %v1561 = vmul.f32 %v1528, %v1552
        %v1562 = vmul.f32 %v1529, %v1552
        %v1563 = vmul.f32 %v1530, %v1552
        %v1564 = vmul.f32 %v1531, %v1552
        %v1565 = vmul.f32 %v1532, %v1552
        %v1566 = vmul.f32 %v1533, %v1552
        %v1567 = vmul.f32 %v1534, %v1552
        %v1568 = vmul.f32 %v1535, %v1552
        %v1569 = vmul.f32 %v1536, %v1552
        %v1570 = vmul.f32 %v1537, %v1552
        %v1571 = vmul.f32 %v1538, %v1552
        %v1572 = vmul.f32 %v1539, %v1552
        %v1573 = vmul.f32 %v1540, %v1552
        %v1574 = vmul.f32 %v1541, %v1552
        %v1575 = vmul.f32 %v1542, %v1552
        %v1576 = vmul.f32 %v1543, %v1552
        %v1577 = vmul.f32 %v1544, %v1552
        %v1578 = vmul.f32 %v1545, %v1552
        %v1579 = vmul.f32 %v1546, %v1552
        %v1580 = vmul.f32 %v1547, %v1552
        %v1581 = vmul.f32 %v1548, %v1552
        %v1582 = vmul.f32 %v1549, %v1552
        %v1583 = vmul.f32 %v1550, %v1552
        %v1584 = vmul.f32 %v1551, %v1552
        %v1585 = vadd.f32 %v1487, %v1553
        %v1586 = vadd.f32 %v1488, %v1554
        %v1587 = vadd.f32 %v1489, %v1555
        %v1588 = vadd.f32 %v1490, %v1556
        %v1589 = vadd.f32 %v1491, %v1557
        %v1590 = vadd.f32 %v1492, %v1558
        %v1591 = vadd.f32 %v1493, %v1559
        %v1592 = vadd.f32 %v1494, %v1560
        %v1593 = vadd.f32 %v1495, %v1561
        %v1594 = vadd.f32 %v1496, %v1562
        %v1595 = vadd.f32 %v1497, %v1563
        %v1596 = vadd.f32 %v1498, %v1564
        %v1597 = vadd.f32 %v1499, %v1565
        %v1598 = vadd.f32 %v1500, %v1566
        %v1599 = vadd.f32 %v1501, %v1567
        %v1600 = vadd.f32 %v1502, %v1568
        %v1601 = vadd.f32 %v1503, %v1569
        %v1602 = vadd.f32 %v1504, %v1570
        %v1603 = vadd.f32 %v1505, %v1571
        %v1604 = vadd.f32 %v1506, %v1572
        %v1605 = vadd.f32 %v1507, %v1573
        %v1606 = vadd.f32 %v1508, %v1574
        %v1607 = vadd.f32 %v1509, %v1575
        %v1608 = vadd.f32 %v1510, %v1576
        %v1609 = vadd.f32 %v1511, %v1577
        %v1610 = vadd.f32 %v1512, %v1578
        %v1611 = vadd.f32 %v1513, %v1579
        %v1612 = vadd.f32 %v1514, %v1580
        %v1613 = vadd.f32 %v1515, %v1581
        %v1614 = vadd.f32 %v1516, %v1582
        %v1615 = vadd.f32 %v1517, %v1583
        %v1616 = vadd.f32 %v1518, %v1584
        %v1617 = vld [vmem:[%s1519 + $0x1] sm:$0xff]
        %v1618 = vld [vmem:[%s1519 + $0x9] sm:$0xff]
        %v1619 = vld [vmem:[%s1519 + $0x19] sm:$0xff]
        %v1620 = vld [vmem:[%s1519 + $0x21] sm:$0xff]
        %v1621 = vld [vmem:[%s1519 + $0x31] sm:$0xff]
        %v1622 = vld [vmem:[%s1519 + $0x39] sm:$0xff]
        %v1623 = vld [vmem:[%s1519 + $0x49] sm:$0xff]
        %v1624 = vld [vmem:[%s1519 + $0x51] sm:$0xff]
        %v1625 = vld [vmem:[%s1519 + $0x61] sm:$0xff]
        %v1626 = vld [vmem:[%s1519 + $0x69] sm:$0xff]
        %v1627 = vld [vmem:[%s1519 + $0x79] sm:$0xff]
        %v1628 = vld [vmem:[%s1519 + $0x81] sm:$0xff]
        %v1629 = vld [vmem:[%s1519 + $0x91] sm:$0xff]
        %v1630 = vld [vmem:[%s1519 + $0x99] sm:$0xff]
        %v1631 = vld [vmem:[%s1519 + $0xa9] sm:$0xff]
        %v1632 = vld [vmem:[%s1519 + $0xb1] sm:$0xff]
        %v1633 = vld [vmem:[%s1519 + $0xc1] sm:$0xff]
        %v1634 = vld [vmem:[%s1519 + $0xc9] sm:$0xff]
        %v1635 = vld [vmem:[%s1519 + $0xd9] sm:$0xff]
        %v1636 = vld [vmem:[%s1519 + $0xe1] sm:$0xff]
        %v1637 = vld [vmem:[%s1519 + $0xf1] sm:$0xff]
        %v1638 = vld [vmem:[%s1519 + $0xf9] sm:$0xff]
        %v1639 = vld [vmem:[%s1519 + $0x109] sm:$0xff]
        %v1640 = vld [vmem:[%s1519 + $0x111] sm:$0xff]
        %v1641 = vld [vmem:[%s1519 + $0x121] sm:$0xff]
        %v1642 = vld [vmem:[%s1519 + $0x129] sm:$0xff]
        %v1643 = vld [vmem:[%s1519 + $0x139] sm:$0xff]
        %v1644 = vld [vmem:[%s1519 + $0x141] sm:$0xff]
        %v1645 = vld [vmem:[%s1519 + $0x151] sm:$0xff]
        %v1646 = vld [vmem:[%s1519 + $0x159] sm:$0xff]
        %v1647 = vld [vmem:[%s1519 + $0x169] sm:$0xff]
        %v1648 = vld [vmem:[%s1519 + $0x171] sm:$0xff]
        %v1649 = vperm.slane %v934, 7
        %v1650 = vmul.f32 %v1617, %v1649
        %v1651 = vmul.f32 %v1618, %v1649
        %v1652 = vmul.f32 %v1619, %v1649
        %v1653 = vmul.f32 %v1620, %v1649
        %v1654 = vmul.f32 %v1621, %v1649
        %v1655 = vmul.f32 %v1622, %v1649
        %v1656 = vmul.f32 %v1623, %v1649
        %v1657 = vmul.f32 %v1624, %v1649
        %v1658 = vmul.f32 %v1625, %v1649
        %v1659 = vmul.f32 %v1626, %v1649
        %v1660 = vmul.f32 %v1627, %v1649
        %v1661 = vmul.f32 %v1628, %v1649
        %v1662 = vmul.f32 %v1629, %v1649
        %v1663 = vmul.f32 %v1630, %v1649
        %v1664 = vmul.f32 %v1631, %v1649
        %v1665 = vmul.f32 %v1632, %v1649
        %v1666 = vmul.f32 %v1633, %v1649
        %v1667 = vmul.f32 %v1634, %v1649
        %v1668 = vmul.f32 %v1635, %v1649
        %v1669 = vmul.f32 %v1636, %v1649
        %v1670 = vmul.f32 %v1637, %v1649
        %v1671 = vmul.f32 %v1638, %v1649
        %v1672 = vmul.f32 %v1639, %v1649
        %v1673 = vmul.f32 %v1640, %v1649
        %v1674 = vmul.f32 %v1641, %v1649
        %v1675 = vmul.f32 %v1642, %v1649
        %v1676 = vmul.f32 %v1643, %v1649
        %v1677 = vmul.f32 %v1644, %v1649
        %v1678 = vmul.f32 %v1645, %v1649
        %v1679 = vmul.f32 %v1646, %v1649
        %v1680 = vmul.f32 %v1647, %v1649
        %v1681 = vmul.f32 %v1648, %v1649
        %v1682 = vadd.f32 %v1585, %v1650
        %v1683 = vadd.f32 %v1586, %v1651
        %v1684 = vadd.f32 %v1587, %v1652
        %v1685 = vadd.f32 %v1588, %v1653
        %v1686 = vadd.f32 %v1589, %v1654
        %v1687 = vadd.f32 %v1590, %v1655
        %v1688 = vadd.f32 %v1591, %v1656
        %v1689 = vadd.f32 %v1592, %v1657
        %v1690 = vadd.f32 %v1593, %v1658
        %v1691 = vadd.f32 %v1594, %v1659
        %v1692 = vadd.f32 %v1595, %v1660
        %v1693 = vadd.f32 %v1596, %v1661
        %v1694 = vadd.f32 %v1597, %v1662
        %v1695 = vadd.f32 %v1598, %v1663
        %v1696 = vadd.f32 %v1599, %v1664
        %v1697 = vadd.f32 %v1600, %v1665
        %v1698 = vadd.f32 %v1601, %v1666
        %v1699 = vadd.f32 %v1602, %v1667
        %v1700 = vadd.f32 %v1603, %v1668
        %v1701 = vadd.f32 %v1604, %v1669
        %v1702 = vadd.f32 %v1605, %v1670
        %v1703 = vadd.f32 %v1606, %v1671
        %v1704 = vadd.f32 %v1607, %v1672
        %v1705 = vadd.f32 %v1608, %v1673
        %v1706 = vadd.f32 %v1609, %v1674
        %v1707 = vadd.f32 %v1610, %v1675
        %v1708 = vadd.f32 %v1611, %v1676
        %v1709 = vadd.f32 %v1612, %v1677
        %v1710 = vadd.f32 %v1613, %v1678
        %v1711 = vadd.f32 %v1614, %v1679
        %v1712 = vadd.f32 %v1615, %v1680
        %v1713 = vadd.f32 %v1616, %v1681
        %v1714 = vld [vmem:[%s1519 + $0x2] sm:$0xff]
        %v1715 = vld [vmem:[%s1519 + $0xa] sm:$0xff]
        %v1716 = vld [vmem:[%s1519 + $0x1a] sm:$0xff]
        %v1717 = vld [vmem:[%s1519 + $0x22] sm:$0xff]
        %v1718 = vld [vmem:[%s1519 + $0x32] sm:$0xff]
        %v1719 = vld [vmem:[%s1519 + $0x3a] sm:$0xff]
        %v1720 = vld [vmem:[%s1519 + $0x4a] sm:$0xff]
        %v1721 = vld [vmem:[%s1519 + $0x52] sm:$0xff]
        %v1722 = vld [vmem:[%s1519 + $0x62] sm:$0xff]
        %v1723 = vld [vmem:[%s1519 + $0x6a] sm:$0xff]
        %v1724 = vld [vmem:[%s1519 + $0x7a] sm:$0xff]
        %v1725 = vld [vmem:[%s1519 + $0x82] sm:$0xff]
        %v1726 = vld [vmem:[%s1519 + $0x92] sm:$0xff]
        %v1727 = vld [vmem:[%s1519 + $0x9a] sm:$0xff]
        %v1728 = vld [vmem:[%s1519 + $0xaa] sm:$0xff]
        %v1729 = vld [vmem:[%s1519 + $0xb2] sm:$0xff]
        %v1730 = vld [vmem:[%s1519 + $0xc2] sm:$0xff]
        %v1731 = vld [vmem:[%s1519 + $0xca] sm:$0xff]
        %v1732 = vld [vmem:[%s1519 + $0xda] sm:$0xff]
        %v1733 = vld [vmem:[%s1519 + $0xe2] sm:$0xff]
        %v1734 = vld [vmem:[%s1519 + $0xf2] sm:$0xff]
        %v1735 = vld [vmem:[%s1519 + $0xfa] sm:$0xff]
        %v1736 = vld [vmem:[%s1519 + $0x10a] sm:$0xff]
        %v1737 = vld [vmem:[%s1519 + $0x112] sm:$0xff]
        %v1738 = vld [vmem:[%s1519 + $0x122] sm:$0xff]
        %v1739 = vld [vmem:[%s1519 + $0x12a] sm:$0xff]
        %v1740 = vld [vmem:[%s1519 + $0x13a] sm:$0xff]
        %v1741 = vld [vmem:[%s1519 + $0x142] sm:$0xff]
        %v1742 = vld [vmem:[%s1519 + $0x152] sm:$0xff]
        %v1743 = vld [vmem:[%s1519 + $0x15a] sm:$0xff]
        %v1744 = vld [vmem:[%s1519 + $0x16a] sm:$0xff]
        %v1745 = vld [vmem:[%s1519 + $0x172] sm:$0xff]
        %v1746 = vperm.slane %v935, 0
        %v1747 = vmul.f32 %v1714, %v1746
        %v1748 = vmul.f32 %v1715, %v1746
        %v1749 = vmul.f32 %v1716, %v1746
        %v1750 = vmul.f32 %v1717, %v1746
        %v1751 = vmul.f32 %v1718, %v1746
        %v1752 = vmul.f32 %v1719, %v1746
        %v1753 = vmul.f32 %v1720, %v1746
        %v1754 = vmul.f32 %v1721, %v1746
        %v1755 = vmul.f32 %v1722, %v1746
        %v1756 = vmul.f32 %v1723, %v1746
        %v1757 = vmul.f32 %v1724, %v1746
        %v1758 = vmul.f32 %v1725, %v1746
        %v1759 = vmul.f32 %v1726, %v1746
        %v1760 = vmul.f32 %v1727, %v1746
        %v1761 = vmul.f32 %v1728, %v1746
        %v1762 = vmul.f32 %v1729, %v1746
        %v1763 = vmul.f32 %v1730, %v1746
        %v1764 = vmul.f32 %v1731, %v1746
        %v1765 = vmul.f32 %v1732, %v1746
        %v1766 = vmul.f32 %v1733, %v1746
        %v1767 = vmul.f32 %v1734, %v1746
        %v1768 = vmul.f32 %v1735, %v1746
        %v1769 = vmul.f32 %v1736, %v1746
        %v1770 = vmul.f32 %v1737, %v1746
        %v1771 = vmul.f32 %v1738, %v1746
        %v1772 = vmul.f32 %v1739, %v1746
        %v1773 = vmul.f32 %v1740, %v1746
        %v1774 = vmul.f32 %v1741, %v1746
        %v1775 = vmul.f32 %v1742, %v1746
        %v1776 = vmul.f32 %v1743, %v1746
        %v1777 = vmul.f32 %v1744, %v1746
        %v1778 = vmul.f32 %v1745, %v1746
        %v1779 = vadd.f32 %v1682, %v1747
        %v1780 = vadd.f32 %v1683, %v1748
        %v1781 = vadd.f32 %v1684, %v1749
        %v1782 = vadd.f32 %v1685, %v1750
        %v1783 = vadd.f32 %v1686, %v1751
        %v1784 = vadd.f32 %v1687, %v1752
        %v1785 = vadd.f32 %v1688, %v1753
        %v1786 = vadd.f32 %v1689, %v1754
        %v1787 = vadd.f32 %v1690, %v1755
        %v1788 = vadd.f32 %v1691, %v1756
        %v1789 = vadd.f32 %v1692, %v1757
        %v1790 = vadd.f32 %v1693, %v1758
        %v1791 = vadd.f32 %v1694, %v1759
        %v1792 = vadd.f32 %v1695, %v1760
        %v1793 = vadd.f32 %v1696, %v1761
        %v1794 = vadd.f32 %v1697, %v1762
        %v1795 = vadd.f32 %v1698, %v1763
        %v1796 = vadd.f32 %v1699, %v1764
        %v1797 = vadd.f32 %v1700, %v1765
        %v1798 = vadd.f32 %v1701, %v1766
        %v1799 = vadd.f32 %v1702, %v1767
        %v1800 = vadd.f32 %v1703, %v1768
        %v1801 = vadd.f32 %v1704, %v1769
        %v1802 = vadd.f32 %v1705, %v1770
        %v1803 = vadd.f32 %v1706, %v1771
        %v1804 = vadd.f32 %v1707, %v1772
        %v1805 = vadd.f32 %v1708, %v1773
        %v1806 = vadd.f32 %v1709, %v1774
        %v1807 = vadd.f32 %v1710, %v1775
        %v1808 = vadd.f32 %v1711, %v1776
        %v1809 = vadd.f32 %v1712, %v1777
        %v1810 = vadd.f32 %v1713, %v1778
        %v1812 = vperm.slane %v936, 0
        %v1814 = vadd.f32 %v1779, %v1812
        %v1815 = vadd.f32 %v1780, %v1812
        %v1816 = vadd.f32 %v1781, %v1812
        %v1817 = vadd.f32 %v1782, %v1812
        %v1818 = vadd.f32 %v1783, %v1812
        %v1819 = vadd.f32 %v1784, %v1812
        %v1820 = vadd.f32 %v1785, %v1812
        %v1821 = vadd.f32 %v1786, %v1812
        %v1822 = vadd.f32 %v1787, %v1812
        %v1823 = vadd.f32 %v1788, %v1812
        %v1824 = vadd.f32 %v1789, %v1812
        %v1825 = vadd.f32 %v1790, %v1812
        %v1826 = vadd.f32 %v1791, %v1812
        %v1827 = vadd.f32 %v1792, %v1812
        %v1828 = vadd.f32 %v1793, %v1812
        %v1829 = vadd.f32 %v1794, %v1812
        %v1830 = vadd.f32 %v1795, %v1812
        %v1831 = vadd.f32 %v1796, %v1812
        %v1832 = vadd.f32 %v1797, %v1812
        %v1833 = vadd.f32 %v1798, %v1812
        %v1834 = vadd.f32 %v1799, %v1812
        %v1835 = vadd.f32 %v1800, %v1812
        %v1836 = vadd.f32 %v1801, %v1812
        %v1837 = vadd.f32 %v1802, %v1812
        %v1838 = vadd.f32 %v1803, %v1812
        %v1839 = vadd.f32 %v1804, %v1812
        %v1840 = vadd.f32 %v1805, %v1812
        %v1841 = vadd.f32 %v1806, %v1812
        %v1842 = vadd.f32 %v1807, %v1812
        %v1843 = vadd.f32 %v1808, %v1812
        %v1844 = vadd.f32 %v1809, %v1812
        %v1845 = vadd.f32 %v1810, %v1812
        %v1846 = vadd.f32 %v1814, 3.0
        %v1847 = vadd.f32 %v1815, 3.0
        %v1848 = vadd.f32 %v1816, 3.0
        %v1849 = vadd.f32 %v1817, 3.0
        %v1850 = vadd.f32 %v1818, 3.0
        %v1851 = vadd.f32 %v1819, 3.0
        %v1852 = vadd.f32 %v1820, 3.0
        %v1853 = vadd.f32 %v1821, 3.0
        %v1854 = vadd.f32 %v1822, 3.0
        %v1855 = vadd.f32 %v1823, 3.0
        %v1856 = vadd.f32 %v1824, 3.0
        %v1857 = vadd.f32 %v1825, 3.0
        %v1858 = vadd.f32 %v1826, 3.0
        %v1859 = vadd.f32 %v1827, 3.0
        %v1860 = vadd.f32 %v1828, 3.0
        %v1861 = vadd.f32 %v1829, 3.0
        %v1862 = vadd.f32 %v1830, 3.0
        %v1863 = vadd.f32 %v1831, 3.0
        %v1864 = vadd.f32 %v1832, 3.0
        %v1865 = vadd.f32 %v1833, 3.0
        %v1866 = vadd.f32 %v1834, 3.0
        %v1867 = vadd.f32 %v1835, 3.0
        %v1868 = vadd.f32 %v1836, 3.0
        %v1869 = vadd.f32 %v1837, 3.0
        %v1870 = vadd.f32 %v1838, 3.0
        %v1871 = vadd.f32 %v1839, 3.0
        %v1872 = vadd.f32 %v1840, 3.0
        %v1873 = vadd.f32 %v1841, 3.0
        %v1874 = vadd.f32 %v1842, 3.0
        %v1875 = vadd.f32 %v1843, 3.0
        %v1876 = vadd.f32 %v1844, 3.0
        %v1877 = vadd.f32 %v1845, 3.0
        %v1878 = vmax.f32 %v1846, 0.0
        %v1879 = vmax.f32 %v1847, 0.0
        %v1880 = vmax.f32 %v1848, 0.0
        %v1881 = vmax.f32 %v1849, 0.0
        %v1882 = vmax.f32 %v1850, 0.0
        %v1883 = vmax.f32 %v1851, 0.0
        %v1884 = vmax.f32 %v1852, 0.0
        %v1885 = vmax.f32 %v1853, 0.0
        %v1886 = vmax.f32 %v1854, 0.0
        %v1887 = vmax.f32 %v1855, 0.0
        %v1888 = vmax.f32 %v1856, 0.0
        %v1889 = vmax.f32 %v1857, 0.0
        %v1890 = vmax.f32 %v1858, 0.0
        %v1891 = vmax.f32 %v1859, 0.0
        %v1892 = vmax.f32 %v1860, 0.0
        %v1893 = vmax.f32 %v1861, 0.0
        %v1894 = vmax.f32 %v1862, 0.0
        %v1895 = vmax.f32 %v1863, 0.0
        %v1896 = vmax.f32 %v1864, 0.0
        %v1897 = vmax.f32 %v1865, 0.0
        %v1898 = vmax.f32 %v1866, 0.0
        %v1899 = vmax.f32 %v1867, 0.0
        %v1900 = vmax.f32 %v1868, 0.0
        %v1901 = vmax.f32 %v1869, 0.0
        %v1902 = vmax.f32 %v1870, 0.0
        %v1903 = vmax.f32 %v1871, 0.0
        %v1904 = vmax.f32 %v1872, 0.0
        %v1905 = vmax.f32 %v1873, 0.0
        %v1906 = vmax.f32 %v1874, 0.0
        %v1907 = vmax.f32 %v1875, 0.0
        %v1908 = vmax.f32 %v1876, 0.0
        %v1909 = vmax.f32 %v1877, 0.0
        %v1910 = vmin.f32 %v1878, 6.0
        %v1911 = vmin.f32 %v1879, 6.0
        %v1912 = vmin.f32 %v1880, 6.0
        %v1913 = vmin.f32 %v1881, 6.0
        %v1914 = vmin.f32 %v1882, 6.0
        %v1915 = vmin.f32 %v1883, 6.0
        %v1916 = vmin.f32 %v1884, 6.0
        %v1917 = vmin.f32 %v1885, 6.0
        %v1918 = vmin.f32 %v1886, 6.0
        %v1919 = vmin.f32 %v1887, 6.0
        %v1920 = vmin.f32 %v1888, 6.0
        %v1921 = vmin.f32 %v1889, 6.0
        %v1922 = vmin.f32 %v1890, 6.0
        %v1923 = vmin.f32 %v1891, 6.0
        %v1924 = vmin.f32 %v1892, 6.0
        %v1925 = vmin.f32 %v1893, 6.0
        %v1926 = vmin.f32 %v1894, 6.0
        %v1927 = vmin.f32 %v1895, 6.0
        %v1928 = vmin.f32 %v1896, 6.0
        %v1929 = vmin.f32 %v1897, 6.0
        %v1930 = vmin.f32 %v1898, 6.0
        %v1931 = vmin.f32 %v1899, 6.0
        %v1932 = vmin.f32 %v1900, 6.0
        %v1933 = vmin.f32 %v1901, 6.0
        %v1934 = vmin.f32 %v1902, 6.0
        %v1935 = vmin.f32 %v1903, 6.0
        %v1936 = vmin.f32 %v1904, 6.0
        %v1937 = vmin.f32 %v1905, 6.0
        %v1938 = vmin.f32 %v1906, 6.0
        %v1939 = vmin.f32 %v1907, 6.0
        %v1940 = vmin.f32 %v1908, 6.0
        %v1941 = vmin.f32 %v1909, 6.0
        %v1942 = vmul.f32 %v1814, %v1910
        %v1943 = vmul.f32 %v1815, %v1911
        %v1944 = vmul.f32 %v1816, %v1912
        %v1945 = vmul.f32 %v1817, %v1913
        %v1946 = vmul.f32 %v1818, %v1914
        %v1947 = vmul.f32 %v1819, %v1915
        %v1948 = vmul.f32 %v1820, %v1916
        %v1949 = vmul.f32 %v1821, %v1917
        %v1950 = vmul.f32 %v1822, %v1918
        %v1951 = vmul.f32 %v1823, %v1919
        %v1952 = vmul.f32 %v1824, %v1920
        %v1953 = vmul.f32 %v1825, %v1921
        %v1954 = vmul.f32 %v1826, %v1922
        %v1955 = vmul.f32 %v1827, %v1923
        %v1956 = vmul.f32 %v1828, %v1924
        %v1957 = vmul.f32 %v1829, %v1925
        %v1958 = vmul.f32 %v1830, %v1926
        %v1959 = vmul.f32 %v1831, %v1927
        %v1960 = vmul.f32 %v1832, %v1928
        %v1961 = vmul.f32 %v1833, %v1929
        %v1962 = vmul.f32 %v1834, %v1930
        %v1963 = vmul.f32 %v1835, %v1931
        %v1964 = vmul.f32 %v1836, %v1932
        %v1965 = vmul.f32 %v1837, %v1933
        %v1966 = vmul.f32 %v1838, %v1934
        %v1967 = vmul.f32 %v1839, %v1935
        %v1968 = vmul.f32 %v1840, %v1936
        %v1969 = vmul.f32 %v1841, %v1937
        %v1970 = vmul.f32 %v1842, %v1938
        %v1971 = vmul.f32 %v1843, %v1939
        %v1972 = vmul.f32 %v1844, %v1940
        %v1973 = vmul.f32 %v1845, %v1941
        %v1974 = vmul.f32 %v1942, 0.16666667
        %v1975 = vmul.f32 %v1943, 0.16666667
        %v1976 = vmul.f32 %v1944, 0.16666667
        %v1977 = vmul.f32 %v1945, 0.16666667
        %v1978 = vmul.f32 %v1946, 0.16666667
        %v1979 = vmul.f32 %v1947, 0.16666667
        %v1980 = vmul.f32 %v1948, 0.16666667
        %v1981 = vmul.f32 %v1949, 0.16666667
        %v1982 = vmul.f32 %v1950, 0.16666667
        %v1983 = vmul.f32 %v1951, 0.16666667
        %v1984 = vmul.f32 %v1952, 0.16666667
        %v1985 = vmul.f32 %v1953, 0.16666667
        %v1986 = vmul.f32 %v1954, 0.16666667
        %v1987 = vmul.f32 %v1955, 0.16666667
        %v1988 = vmul.f32 %v1956, 0.16666667
        %v1989 = vmul.f32 %v1957, 0.16666667
        %v1990 = vmul.f32 %v1958, 0.16666667
        %v1991 = vmul.f32 %v1959, 0.16666667
        %v1992 = vmul.f32 %v1960, 0.16666667
        %v1993 = vmul.f32 %v1961, 0.16666667
        %v1994 = vmul.f32 %v1962, 0.16666667
        %v1995 = vmul.f32 %v1963, 0.16666667
        %v1996 = vmul.f32 %v1964, 0.16666667
        %v1997 = vmul.f32 %v1965, 0.16666667
        %v1998 = vmul.f32 %v1966, 0.16666667
        %v1999 = vmul.f32 %v1967, 0.16666667
        %v2000 = vmul.f32 %v1968, 0.16666667
        %v2001 = vmul.f32 %v1969, 0.16666667
        %v2002 = vmul.f32 %v1970, 0.16666667
        %v2003 = vmul.f32 %v1971, 0.16666667
        %v2004 = vmul.f32 %v1972, 0.16666667
        %v2005 = vmul.f32 %v1973, 0.16666667
        %v2006 = vpack.c.bf16 %v1974, %v1974
        %v2007 = vpack.c.bf16 %v1975, %v1975
        %v2008 = vpack.c.bf16 %v1976, %v1976
        %v2009 = vpack.c.bf16 %v1977, %v1977
        %v2010 = vpack.c.bf16 %v1978, %v1978
        %v2011 = vpack.c.bf16 %v1979, %v1979
        %v2012 = vpack.c.bf16 %v1980, %v1980
        %v2013 = vpack.c.bf16 %v1981, %v1981
        %v2014 = vpack.c.bf16 %v1982, %v1982
        %v2015 = vpack.c.bf16 %v1983, %v1983
        %v2016 = vpack.c.bf16 %v1984, %v1984
        %v2017 = vpack.c.bf16 %v1985, %v1985
        %v2018 = vpack.c.bf16 %v1986, %v1986
        %v2019 = vpack.c.bf16 %v1987, %v1987
        %v2020 = vpack.c.bf16 %v1988, %v1988
        %v2021 = vpack.c.bf16 %v1989, %v1989
        %v2022 = vpack.c.bf16 %v1990, %v1990
        %v2023 = vpack.c.bf16 %v1991, %v1991
        %v2024 = vpack.c.bf16 %v1992, %v1992
        %v2025 = vpack.c.bf16 %v1993, %v1993
        %v2026 = vpack.c.bf16 %v1994, %v1994
        %v2027 = vpack.c.bf16 %v1995, %v1995
        %v2028 = vpack.c.bf16 %v1996, %v1996
        %v2029 = vpack.c.bf16 %v1997, %v1997
        %v2030 = vpack.c.bf16 %v1998, %v1998
        %v2031 = vpack.c.bf16 %v1999, %v1999
        %v2032 = vpack.c.bf16 %v2000, %v2000
        %v2033 = vpack.c.bf16 %v2001, %v2001
        %v2034 = vpack.c.bf16 %v2002, %v2002
        %v2035 = vpack.c.bf16 %v2003, %v2003
        %v2036 = vpack.c.bf16 %v2004, %v2004
        %v2037 = vpack.c.bf16 %v2005, %v2005
        %2038 = vst [vmem:[%s395] sm:$0xf] %v2006
        %2039 = vst [vmem:[%s395 + $0x4] sm:$0xf] %v2007
        %2040 = vst [vmem:[%s395 + $0x8] sm:$0xf] %v2008
        %2041 = vst [vmem:[%s395 + $0xc] sm:$0xf] %v2009
        %2042 = vst [vmem:[%s395 + $0x10] sm:$0xf] %v2010
        %2043 = vst [vmem:[%s395 + $0x14] sm:$0xf] %v2011
        %2044 = vst [vmem:[%s395 + $0x18] sm:$0xf] %v2012
        %2045 = vst [vmem:[%s395 + $0x1c] sm:$0xf] %v2013
        %2046 = vst [vmem:[%s395 + $0x20] sm:$0xf] %v2014
        %2047 = vst [vmem:[%s395 + $0x24] sm:$0xf] %v2015
        %2048 = vst [vmem:[%s395 + $0x28] sm:$0xf] %v2016
        %2049 = vst [vmem:[%s395 + $0x2c] sm:$0xf] %v2017
        %2050 = vst [vmem:[%s395 + $0x30] sm:$0xf] %v2018
        %2051 = vst [vmem:[%s395 + $0x34] sm:$0xf] %v2019
        %2052 = vst [vmem:[%s395 + $0x38] sm:$0xf] %v2020
        %2053 = vst [vmem:[%s395 + $0x3c] sm:$0xf] %v2021
        %2054 = vst [vmem:[%s395 + $0x40] sm:$0xf] %v2022
        %2055 = vst [vmem:[%s395 + $0x44] sm:$0xf] %v2023
        %2056 = vst [vmem:[%s395 + $0x48] sm:$0xf] %v2024
        %2057 = vst [vmem:[%s395 + $0x4c] sm:$0xf] %v2025
        %2058 = vst [vmem:[%s395 + $0x50] sm:$0xf] %v2026
        %2059 = vst [vmem:[%s395 + $0x54] sm:$0xf] %v2027
        %2060 = vst [vmem:[%s395 + $0x58] sm:$0xf] %v2028
        %2061 = vst [vmem:[%s395 + $0x5c] sm:$0xf] %v2029
        %2062 = vst [vmem:[%s395 + $0x60] sm:$0xf] %v2030
        %2063 = vst [vmem:[%s395 + $0x64] sm:$0xf] %v2031
        %2064 = vst [vmem:[%s395 + $0x68] sm:$0xf] %v2032
        %2065 = vst [vmem:[%s395 + $0x6c] sm:$0xf] %v2033
        %2066 = vst [vmem:[%s395 + $0x70] sm:$0xf] %v2034
        %2067 = vst [vmem:[%s395 + $0x74] sm:$0xf] %v2035
        %2068 = vst [vmem:[%s395 + $0x78] sm:$0xf] %v2036
        %2069 = vst [vmem:[%s395 + $0x7c] sm:$0xf] %v2037
        %v2070 = vadd.f32 %v1974, %v1975
        %v2071 = vadd.f32 %v2070, %v1976
        %v2072 = vadd.f32 %v2071, %v1977
        %v2073 = vadd.f32 %v2072, %v1978
        %v2074 = vadd.f32 %v2073, %v1979
        %v2075 = vadd.f32 %v2074, %v1980
        %v2076 = vadd.f32 %v2075, %v1981
        %v2077 = vadd.f32 %v2076, %v1982
        %v2078 = vadd.f32 %v2077, %v1983
        %v2079 = vadd.f32 %v2078, %v1984
        %v2080 = vadd.f32 %v2079, %v1985
        %v2081 = vadd.f32 %v2080, %v1986
        %v2082 = vadd.f32 %v2081, %v1987
        %v2083 = vadd.f32 %v2082, %v1988
        %v2084 = vadd.f32 %v2083, %v1989
        %v2085 = vadd.f32 %v2084, %v1990
        %v2086 = vadd.f32 %v2085, %v1991
        %v2087 = vadd.f32 %v2086, %v1992
        %v2088 = vadd.f32 %v2087, %v1993
        %v2089 = vadd.f32 %v2088, %v1994
        %v2090 = vadd.f32 %v2089, %v1995
        %v2091 = vadd.f32 %v2090, %v1996
        %v2092 = vadd.f32 %v2091, %v1997
        %v2093 = vadd.f32 %v2092, %v1998
        %v2094 = vadd.f32 %v2093, %v1999
        %v2095 = vadd.f32 %v2094, %v2000
        %v2096 = vadd.f32 %v2095, %v2001
        %v2097 = vadd.f32 %v2096, %v2002
        %v2098 = vadd.f32 %v2097, %v2003
        %v2099 = vadd.f32 %v2098, %v2004
        %v2100 = vadd.f32 %v2099, %v2005
        %v2101 = vrot.slane %v2100, 4
        %v2102 = vadd.f32 %v2100, %v2101
        %v2103 = vrot.slane %v2102, 2
        %v2104 = vadd.f32 %v2102, %v2103
        %v2105 = vrot.slane %v2104, 1
        %v2106 = vadd.f32 %v2104, %v2105
        %v2107 = vmul.f32 %v2106, 0.00390625
        %v2108 = vld [vmem:[#allocation9] sm:$0xff]
        %v2109 = vld [vmem:[#allocation9 + $0x8] sm:$0xff]
        %v2110 = vld [vmem:[#allocation9 + $0x10] sm:$0xff]
        %v2111 = vld [vmem:[#allocation9 + $0x18] sm:$0xff]
        %v2112 = vld [vmem:[#allocation9 + $0x20] sm:$0xff]
        %v2113 = vld [vmem:[#allocation9 + $0x28] sm:$0xff]
        %v2114 = vld [vmem:[#allocation9 + $0x30] sm:$0xff]
        %v2115 = vld [vmem:[#allocation9 + $0x38] sm:$0xff]
        %v2116 = vld [vmem:[#allocation9 + $0x40] sm:$0xff]
        %v2117 = vld [vmem:[#allocation9 + $0x48] sm:$0xff]
        %v2118 = vld [vmem:[#allocation9 + $0x50] sm:$0xff]
        %v2119 = vld [vmem:[#allocation9 + $0x58] sm:$0xff]
        %v2120 = vld [vmem:[#allocation9 + $0x60] sm:$0xff]
        %v2121 = vld [vmem:[#allocation9 + $0x68] sm:$0xff]
        %v2122 = vld [vmem:[#allocation9 + $0x70] sm:$0xff]
        %v2123 = vld [vmem:[#allocation9 + $0x78] sm:$0xff]
        %2124 = vmatpush.msra.mxu0 %v2123
        %2125 = vmatpush.msra.mxu0 %v2122
        %2126 = vmatpush.msra.mxu0 %v2121
        %2127 = vmatpush.msra.mxu0 %v2120
        %2128 = vmatpush.msra.mxu0 %v2119
        %2129 = vmatpush.msra.mxu0 %v2118
        %2130 = vmatpush.msra.mxu0 %v2117
        %2131 = vmatpush.msra.mxu0 %v2116
        %2132 = vmatpush.msra.mxu0 %v2115
        %2133 = vmatpush.msra.mxu0 %v2114
        %2134 = vmatpush.msra.mxu0 %v2113
        %2135 = vmatpush.msra.mxu0 %v2112
        %2136 = vmatpush.msra.mxu0 %v2111
        %2137 = vmatpush.msra.mxu0 %v2110
        %2138 = vmatpush.msra.mxu0 %v2109
        %2139 = vmatpush.msra.mxu0 %v2108
        %2140 = vmatmul.f32.gmra.mxu0 %v2107
        %v2141 = vpop.f32.mrf.mxu0
        %v2142 = vadd.f32 0.0, %v2141
        %2143 = vdwg.mxu0
        %v2144 = vmax.f32 %v2142, 0.0
        %v2145 = vld [vmem:[#allocation11] sm:$0xff]
        %v2146 = vld [vmem:[#allocation11 + $0x8] sm:$0xff]
        %v2147 = vld [vmem:[#allocation11 + $0x10] sm:$0xff]
        %v2148 = vld [vmem:[#allocation11 + $0x18] sm:$0xff]
        %v2149 = vld [vmem:[#allocation11 + $0x20] sm:$0xff]
        %v2150 = vld [vmem:[#allocation11 + $0x28] sm:$0xff]
        %v2151 = vld [vmem:[#allocation11 + $0x30] sm:$0xff]
        %v2152 = vld [vmem:[#allocation11 + $0x38] sm:$0xff]
        %v2153 = vld [vmem:[#allocation11 + $0x40] sm:$0xff]
        %v2154 = vld [vmem:[#allocation11 + $0x48] sm:$0xff]
        %v2155 = vld [vmem:[#allocation11 + $0x50] sm:$0xff]
        %v2156 = vld [vmem:[#allocation11 + $0x58] sm:$0xff]
        %v2157 = vld [vmem:[#allocation11 + $0x60] sm:$0xff]
        %v2158 = vld [vmem:[#allocation11 + $0x68] sm:$0xff]
        %v2159 = vld [vmem:[#allocation11 + $0x70] sm:$0xff]
        %v2160 = vld [vmem:[#allocation11 + $0x78] sm:$0xff]
        %2161 = vmatpush.msra.mxu0 %v2160
        %2162 = vmatpush.msra.mxu0 %v2159
        %2163 = vmatpush.msra.mxu0 %v2158
        %2164 = vmatpush.msra.mxu0 %v2157
        %2165 = vmatpush.msra.mxu0 %v2156
        %2166 = vmatpush.msra.mxu0 %v2155
        %2167 = vmatpush.msra.mxu0 %v2154
        %2168 = vmatpush.msra.mxu0 %v2153
        %2169 = vmatpush.msra.mxu0 %v2152
        %2170 = vmatpush.msra.mxu0 %v2151
        %2171 = vmatpush.msra.mxu0 %v2150
        %2172 = vmatpush.msra.mxu0 %v2149
        %2173 = vmatpush.msra.mxu0 %v2148
        %2174 = vmatpush.msra.mxu0 %v2147
        %2175 = vmatpush.msra.mxu0 %v2146
        %2176 = vmatpush.msra.mxu0 %v2145
        %2177 = vmatmul.f32.gmra.mxu0 %v2144
        %v2178 = vpop.f32.mrf.mxu0
        %v2179 = vadd.f32 3.0, %v2178
        %2180 = vdwg.mxu0
        %v2181 = vmax.f32 %v2179, 0.0
        %v2182 = vmin.f32 %v2181, 6.0
        %v2183 = vmul.f32 %v2182, 0.16666667
        %2184 = vst [vmem:[%s401] sm:$0x1] %v2183
        %s2185 = sand.u32 %s191, 1
        %s2186 = scalar_lea.sflag [#allocation5], %s2185
        %s2187 = sand.u32 %s191, 1
        %s2188 = smul.addr %s2187, 128
        %s2189 = scalar_lea.vmem [#allocation12], %s2188
        %s2190 = sand.u32 %s217, 1
        %s2191 = scalar_lea.sflag [#allocation14], %s2190
        %s2192 = sand.u32 %s217, 1
        %s2193 = scalar_lea.vmem [#allocation13], %s2192
        // Predicated region
        $region69: #{tpu_custom_call.1} parent=47 // pred_check
          %p2194 = pneg %p201
        $region70: #{tpu_custom_call.1} parent=47 // pred_check_branch
          %2196 = sbr.rel (%p2194) target = $region72
        $region71: #{tpu_custom_call.1} parent=47 // pred_region
          %2198 = vsyncadd %s2186, 0
          %s2199 = smul.addr %s31, 32
          %s2200 = smul.addr %s2199, 4
          %s2201 = scalar_lea.hbm %s7, %s2200
          %s2202 = sshll.u32 %s2189, 4
          %s2203 = int_to_ptr.vmem [resolvable:$true] %s2202
          %s2204 = sshll.u32 %s2201, 4
          %s2205 = int_to_ptr.hbm [resolvable:$true] %s2204
          %2210 = dma.vmem_to_hbm [thread:$0]  %s2203, 2048, %s2205, %s2186, 64, 64, 4
        $region72: #{tpu_custom_call.1} parent=47 // pred_fallthru
          _
        // Predicated region
        $region73: #{tpu_custom_call.1} parent=47 // pred_check
          %p2211 = pneg %p227
        $region74: #{tpu_custom_call.1} parent=47 // pred_check_branch
          %2213 = sbr.rel (%p2211) target = $region76
        $region75: #{tpu_custom_call.1} parent=47 // pred_region
          %2215 = vsyncadd %s2191, 0
          %s2216 = scalar_lea.hbm %s8, %s31
          %s2218 = sshll.u32 %s2193, 4
          %s2219 = int_to_ptr.vmem [resolvable:$true] %s2218
          %s2220 = sshll.u32 %s2216, 4
          %s2221 = int_to_ptr.hbm [resolvable:$true] %s2220
          %2223 = dma.vmem_to_hbm [thread:$0]  %s2219, 16, %s2221, %s2191
        $region76: #{tpu_custom_call.1} parent=47 // pred_fallthru
          _
      $region48: #{tpu_custom_call.1} parent=5 // pred_fallthru
        _
      %p2224 = scmp.le.s32.totalorder 2, %s26
      // Predicated region
      $region77: #{tpu_custom_call.1} parent=5 // pred_check
        %p2225 = pneg %p2224
      $region78: #{tpu_custom_call.1} parent=5 // pred_check_branch
        %2227 = sbr.rel (%p2225) target = $region80
      $region79: #{tpu_custom_call.1} parent=5 // pred_region
        %s2228 = ssub.s32 %s26, 2
        // Predicated region
        $region81: #{tpu_custom_call.1} parent=79 // pred_check
          %p2229 = pneg %p207
        $region82: #{tpu_custom_call.1} parent=79 // pred_check_branch
          %2231 = sbr.rel (%p2229) target = $region84
        $region83: #{tpu_custom_call.1} parent=79 // pred_region
          %s2232 = sand.u32 %s192, 1
          %s2233 = scalar_lea.sflag [#allocation5], %s2232
          %s2234 = sand.u32 %s192, 1
          %s2235 = smul.addr %s2234, 128
          %s2236 = scalar_lea.vmem [#allocation12], %s2235
          %2238 = dma.done %s2233, 2048
        $region84: #{tpu_custom_call.1} parent=79 // pred_fallthru
          _
        // Predicated region
        $region85: #{tpu_custom_call.1} parent=79 // pred_check
          %p2239 = pneg %p233
        $region86: #{tpu_custom_call.1} parent=79 // pred_check_branch
          %2241 = sbr.rel (%p2239) target = $region88
        $region87: #{tpu_custom_call.1} parent=79 // pred_region
          %s2242 = sand.u32 %s218, 1
          %s2243 = scalar_lea.sflag [#allocation14], %s2242
          %s2244 = sand.u32 %s218, 1
          %s2245 = scalar_lea.vmem [#allocation13], %s2244
          %2247 = dma.done %s2243, 16
        $region88: #{tpu_custom_call.1} parent=79 // pred_fallthru
          _
      $region80: #{tpu_custom_call.1} parent=5 // pred_fallthru
        _
    $region6: #{tpu_custom_call.1} parent=1 // loop_footer
      %s30 = sadd.s32 1, %s26
    $region7: #{tpu_custom_call.1} parent=1 // loop_footer_branch
      %25 = sbr.rel target = $region3
    $region8: #{tpu_custom_call.1} parent=1 // loop_exit
      _
    %2248 = vsyncpa [#allocation4], 1
    %s2249 = scalar_lea.sflag [#allocation4], 1
    %2250 = vsyncpa %s2249, 1
    %2251 = vsyncpa [#allocation7], 1
    %2252 = vsyncpa [#allocation10], 1
    %2253 = vsyncpa [#allocation5], 1
    %s2254 = scalar_lea.sflag [#allocation5], 1
    %2255 = vsyncpa %s2254, 1
    %2256 = vsyncpa [#allocation14], 1
    %s2257 = scalar_lea.sflag [#allocation14], 1
    %2258 = vsyncpa %s2257, 1

</llo_original>
